<compile_context>
chip_gen: v6e
topology: v6e:2x2x1
jax: 0.10.0
libtpu: 0.0.40
codegen_flags: <defaults>
</compile_context>

<pallas_src>
import functools

import jax
import jax.numpy as jnp
from jax.experimental import pallas as pl
from jax.experimental.pallas import tpu as pltpu


def _round_up(x, m):
    return (x + m - 1) // m * m


_VMEM = pl.BlockSpec(memory_space=pltpu.MemorySpace.VMEM)
_SMEM = pl.BlockSpec(memory_space=pltpu.MemorySpace.SMEM)


# ------------------------------ fused kernel -------------------------------

def _decoder_kernel(tok_ref,        # SMEM (B,)          int32 token ids (padded)
                    emb_ref,        # VMEM (V, XS)       embedding table (E padded to XS)
                    w_ref,          # VMEM (L, XS+H, 4H) fused [W_ih^T ; W_hh^T]
                    b_ref,          # VMEM (L, 1, 4H)    b_ih + b_hh
                    fcw_ref,        # VMEM (H, O_pad)    fc weight^T, O padded to 128
                    fcb_ref,        # VMEM (1, O_pad)
                    h_in_ref,       # VMEM (L, B, H)
                    c_in_ref,       # VMEM (L, B, H)
                    probs_ref,      # out  (B, O_pad)
                    h_out_ref,      # out  (L, B, H)   (aliased with h_in)
                    c_out_ref,      # out  (L, B, H)   (aliased with c_in)
                    xh_ref):        # scratch VMEM (B, XS+H)
    L, B, H = h_in_ref.shape
    V, XS = emb_ref.shape

    # ---- Embedding gather: one-hot(B, V) @ table(V, XS) on the MXU.
    # Exact (0/1 weights), avoids a separate XLA gather + HBM round trip.
    row_ids = jax.lax.broadcasted_iota(jnp.int32, (B, V), 0)
    col_ids = jax.lax.broadcasted_iota(jnp.int32, (B, V), 1)
    onehot = jnp.zeros((B, V), jnp.float32)
    for b in range(B):
        onehot = onehot + jnp.where(
            (row_ids == b) & (col_ids == tok_ref[b]), 1.0, 0.0)
    x0 = jnp.dot(onehot, emb_ref[...],
                 precision=jax.lax.Precision.HIGHEST,
                 preferred_element_type=jnp.float32)          # (B, XS)
    # TODO(synk): training-mode dropout (p > 0) on the embedding not emulated.

    # ---- Stacked LSTM layers (seq_len == 1), statically unrolled.
    xh_ref[:, :XS] = x0                                       # x-slot
    h_new = None
    for l in range(L):
        c_prev = c_in_ref[l]
        xh_ref[:, XS:] = h_in_ref[l]                          # h-slot
        gates = jnp.dot(xh_ref[...], w_ref[l],
                        precision=jax.lax.Precision.HIGHEST,
                        preferred_element_type=jnp.float32) + b_ref[l]
        i = jax.nn.sigmoid(gates[:, 0 * H:1 * H])
        f = jax.nn.sigmoid(gates[:, 1 * H:2 * H])
        g = jnp.tanh(gates[:, 2 * H:3 * H])
        o = jax.nn.sigmoid(gates[:, 3 * H:4 * H])
        c_new = f * c_prev + i * g
        h_new = o * jnp.tanh(c_new)
        h_out_ref[l] = h_new.astype(h_out_ref.dtype)
        c_out_ref[l] = c_new.astype(c_out_ref.dtype)
        # Next layer's input goes into the x-slot.
        xh_ref[:, :H] = h_new
        if l == 0 and XS > H:
            xh_ref[:, H:XS] = jnp.zeros((B, XS - H), jnp.float32)

    # ---- Final linear (lane-dense padded output).
    probs_ref[...] = (jnp.dot(h_new, fcw_ref[...],
                              precision=jax.lax.Precision.HIGHEST,
                              preferred_element_type=jnp.float32)
                      + fcb_ref[...]).astype(probs_ref.dtype)


# ------------------------------ parameter init -----------------------------

def init_decoder_params(key, input_size, embedding_size, hidden_size,
                        output_size, num_layers):
    """Shapes mirror nn.Embedding / nn.LSTM / nn.Linear; weights are pre-fused
    and pre-padded once at init so the kernel sees lane/sublane-friendly data."""
    H = hidden_size
    E = embedding_size
    XS = max(E, H)                       # width of the x-slot in [x | h]
    O_pad = _round_up(output_size, 128)  # lane-dense fc output

    ks = jax.random.split(key, 1 + 4 * num_layers + 2)
    it = iter(ks)
    bound = 1.0 / jnp.sqrt(hidden_size)

    emb = jax.random.normal(next(it), (input_size, E), jnp.float32)
    emb_p = jnp.zeros((input_size, XS), jnp.float32).at[:, :E].set(emb)

    w_layers, b_layers = [], []
    for l in range(num_layers):
        in_dim = E if l == 0 else H
        w_ih = jax.random.uniform(next(it), (4 * H, in_dim), jnp.float32, -bound, bound)
        w_hh = jax.random.uniform(next(it), (4 * H, H), jnp.float32, -bound, bound)
        b_ih = jax.random.uniform(next(it), (4 * H,), jnp.float32, -bound, bound)
        b_hh = jax.random.uniform(next(it), (4 * H,), jnp.float32, -bound, bound)
        # Fused weight for [x | h] @ W: rows [0:in_dim) = W_ih^T (zero padded to XS),
        #                               rows [XS:XS+H)  = W_hh^T.
        w = jnp.zeros((XS + H, 4 * H), jnp.float32)
        w = w.at[:in_dim, :].set(w_ih.T)
        w = w.at[XS:XS + H, :].set(w_hh.T)
        w_layers.append(w)
        b_layers.append((b_ih + b_hh).reshape(1, 4 * H))

    fc_w = jax.random.uniform(next(it), (output_size, H), jnp.float32, -bound, bound)
    fc_b = jax.random.uniform(next(it), (output_size,), jnp.float32, -bound, bound)
    fc_w_p = jnp.zeros((H, O_pad), jnp.float32).at[:, :output_size].set(fc_w.T)
    fc_b_p = jnp.zeros((1, O_pad), jnp.float32).at[:, :output_size].set(fc_b)

    return {
        "embedding": emb_p,                        # (V, XS)
        "lstm_w": jnp.stack(w_layers, axis=0),     # (L, XS+H, 4H)
        "lstm_b": jnp.stack(b_layers, axis=0),     # (L, 1, 4H)
        "fc_w_t": fc_w_p,                          # (H, O_pad)
        "fc_b": fc_b_p,                            # (1, O_pad)
    }


# -------------------------------- forward ----------------------------------

@functools.partial(jax.jit, static_argnames=("output_size",))
def decoder_forward(params, x_tokens, hidden, cell, *, output_size):
    """Equivalent of Decoder.forward (eval mode, p=0 dropout).

    x_tokens: (B,) int token ids   hidden/cell: (L, B, H)
    returns: probs (B, output_size), hidden (L, B, H), cell (L, B, H)
    """
    L, B, H = hidden.shape
    B_pad = max(8, _round_up(B, 8))                 # full f32 sublanes
    XS = params["embedding"].shape[1]
    O_pad = params["fc_w_t"].shape[1]

    tok_p = jnp.zeros((B_pad,), jnp.int32).at[:B].set(x_tokens.astype(jnp.int32))
    h_p = jnp.zeros((L, B_pad, H), jnp.float32).at[:, :B, :].set(hidden)
    c_p = jnp.zeros((L, B_pad, H), jnp.float32).at[:, :B, :].set(cell)

    probs_p, h_out_p, c_out_p = pl.pallas_call(
        _decoder_kernel,
        out_shape=(
            jax.ShapeDtypeStruct((B_pad, O_pad), jnp.float32),
            jax.ShapeDtypeStruct((L, B_pad, H), jnp.float32),
            jax.ShapeDtypeStruct((L, B_pad, H), jnp.float32),
        ),
        in_specs=[
            _SMEM,                       # tokens
            _VMEM, _VMEM, _VMEM,         # embedding, lstm_w, lstm_b
            _VMEM, _VMEM,                # fc_w_t, fc_b
            _VMEM, _VMEM,                # hidden, cell
        ],
        out_specs=(_VMEM, _VMEM, _VMEM),
        scratch_shapes=[pltpu.VMEM((B_pad, XS + H), jnp.float32)],
        # In-place state update: hidden/cell inputs alias the state outputs.
        input_output_aliases={6: 1, 7: 2},
    )(tok_p, params["embedding"], params["lstm_w"], params["lstm_b"],
      params["fc_w_t"], params["fc_b"], h_p, c_p)

    return (probs_p[:B, :output_size],
            h_out_p[:, :B, :],
            c_out_p[:, :B, :])


# ----------------------------- pure-JAX reference ---------------------------

def _reference_forward(params, x_tokens, hidden, cell, output_size):
    L, B, H = hidden.shape
    XS = params["embedding"].shape[1]
    x = params["embedding"][x_tokens]                       # (B, XS)
    new_h, new_c = [], []
    for l in range(L):
        xh = jnp.concatenate([x, hidden[l]], axis=1)        # (B, XS+H)
        gates = xh @ params["lstm_w"][l] + params["lstm_b"][l]
        i = jax.nn.sigmoid(gates[:, 0 * H:1 * H])
        f = jax.nn.sigmoid(gates[:, 1 * H:2 * H])
        g = jnp.tanh(gates[:, 2 * H:3 * H])
        o = jax.nn.sigmoid(gates[:, 3 * H:4 * H])
        c_new = f * cell[l] + i * g
        h_new = o * jnp.tanh(c_new)
        new_h.append(h_new)
        new_c.append(c_new)
        x = jnp.pad(h_new, ((0, 0), (0, XS - H)))
    probs = (new_h[-1] @ params["fc_w_t"] + params["fc_b"])[:, :output_size]
    return probs, jnp.stack(new_h, 0), jnp.stack(new_c, 0)


# ---------------------------------- main ------------------------------------

if __name__ == "__main__":
    INPUT_SIZE = 50       # vocab
    EMBEDDING_SIZE = 16
    HIDDEN_SIZE = 32
    OUTPUT_SIZE = 50
    NUM_LAYERS = 2
    BATCH = 4
    P = 0.0               # dropout prob (identity in eval mode)

    key = jax.random.PRNGKey(0)
    k_params, k_x, k_h, k_c = jax.random.split(key, 4)

    params = init_decoder_params(k_params, INPUT_SIZE, EMBEDDING_SIZE,
                                 HIDDEN_SIZE, OUTPUT_SIZE, NUM_LAYERS)

    x_tokens = jax.random.randint(k_x, (BATCH,), 0, INPUT_SIZE, dtype=jnp.int32)
    hidden = jax.random.normal(k_h, (NUM_LAYERS, BATCH, HIDDEN_SIZE), jnp.float32)
    cell = jax.random.normal(k_c, (NUM_LAYERS, BATCH, HIDDEN_SIZE), jnp.float32)

    probs, h_out, c_out = decoder_forward(params, x_tokens, hidden, cell,
                                          output_size=OUTPUT_SIZE)
    jax.block_until_ready((probs, h_out, c_out))

    assert probs.shape == (BATCH, OUTPUT_SIZE)
    assert h_out.shape == (NUM_LAYERS, BATCH, HIDDEN_SIZE)
    assert c_out.shape == (NUM_LAYERS, BATCH, HIDDEN_SIZE)

    ref_p, ref_h, ref_c = _reference_forward(params, x_tokens, hidden, cell,
                                             OUTPUT_SIZE)
    assert jnp.allclose(probs, ref_p, atol=1e-4, rtol=1e-4)
    assert jnp.allclose(h_out, ref_h, atol=1e-4, rtol=1e-4)
    assert jnp.allclose(c_out, ref_c, atol=1e-4, rtol=1e-4)

    print("KERNEL_OK")
</pallas_src>

<mosaic_0001>
module attributes {stable_mosaic.version = 11 : i64} {
  func.func @_decoder_kernel(%arg0: memref<8xi32, #tpu.memory_space<smem>>, %arg1: memref<50x32xf32, #tpu.memory_space<vmem>>, %arg2: memref<2x64x128xf32, #tpu.memory_space<vmem>>, %arg3: memref<2x1x128xf32, #tpu.memory_space<vmem>>, %arg4: memref<32x128xf32, #tpu.memory_space<vmem>>, %arg5: memref<1x128xf32, #tpu.memory_space<vmem>>, %arg6: memref<2x8x32xf32, #tpu.memory_space<vmem>>, %arg7: memref<2x8x32xf32, #tpu.memory_space<vmem>>, %arg8: memref<8x128xf32, #tpu.memory_space<vmem>>, %arg9: memref<2x8x32xf32, #tpu.memory_space<vmem>>, %arg10: memref<2x8x32xf32, #tpu.memory_space<vmem>>, %arg11: memref<8x64xf32, #tpu.memory_space<vmem>>) attributes {dimension_semantics = [], scalar_prefetch = 0 : i64, scratch_operands = 1 : i64, tpu.core_type = #tpu.core_type<tc>} {
    %0 = tpu.iota {dimensions = array<i32: 0>} : vector<8x50xi32>
    %1 = tpu.iota {dimensions = array<i32: 1>} : vector<8x50xi32>
    %cst = arith.constant 0.000000e+00 : f32
    %2 = vector.broadcast %cst : f32 to vector<8x50xf32>
    %c0_i32 = arith.constant 0 : i32
    %3 = vector.broadcast %c0_i32 : i32 to vector<8x50xi32>
    %4 = arith.cmpi eq, %0, %3 : vector<8x50xi32>
    %c0 = arith.constant 0 : index
    %5 = memref.load %arg0[%c0] : memref<8xi32, #tpu.memory_space<smem>>
    %6 = vector.broadcast %5 : i32 to vector<8x50xi32>
    %7 = arith.cmpi eq, %1, %6 : vector<8x50xi32>
    %8 = arith.andi %4, %7 : vector<8x50xi1>
    %cst_0 = arith.constant 1.000000e+00 : f32
    %cst_1 = arith.constant 0.000000e+00 : f32
    %9 = vector.broadcast %cst_0 : f32 to vector<8x50xf32>
    %10 = vector.broadcast %cst_1 : f32 to vector<8x50xf32>
    %11 = arith.select %8, %9, %10 : vector<8x50xi1>, vector<8x50xf32>
    %12 = arith.addf %2, %11 : vector<8x50xf32>
    %c1_i32 = arith.constant 1 : i32
    %13 = vector.broadcast %c1_i32 : i32 to vector<8x50xi32>
    %14 = arith.cmpi eq, %0, %13 : vector<8x50xi32>
    %c1 = arith.constant 1 : index
    %15 = memref.load %arg0[%c1] : memref<8xi32, #tpu.memory_space<smem>>
    %16 = vector.broadcast %15 : i32 to vector<8x50xi32>
    %17 = arith.cmpi eq, %1, %16 : vector<8x50xi32>
    %18 = arith.andi %14, %17 : vector<8x50xi1>
    %cst_2 = arith.constant 1.000000e+00 : f32
    %cst_3 = arith.constant 0.000000e+00 : f32
    %19 = vector.broadcast %cst_2 : f32 to vector<8x50xf32>
    %20 = vector.broadcast %cst_3 : f32 to vector<8x50xf32>
    %21 = arith.select %18, %19, %20 : vector<8x50xi1>, vector<8x50xf32>
    %22 = arith.addf %12, %21 : vector<8x50xf32>
    %c2_i32 = arith.constant 2 : i32
    %23 = vector.broadcast %c2_i32 : i32 to vector<8x50xi32>
    %24 = arith.cmpi eq, %0, %23 : vector<8x50xi32>
    %c2 = arith.constant 2 : index
    %25 = memref.load %arg0[%c2] : memref<8xi32, #tpu.memory_space<smem>>
    %26 = vector.broadcast %25 : i32 to vector<8x50xi32>
    %27 = arith.cmpi eq, %1, %26 : vector<8x50xi32>
    %28 = arith.andi %24, %27 : vector<8x50xi1>
    %cst_4 = arith.constant 1.000000e+00 : f32
    %cst_5 = arith.constant 0.000000e+00 : f32
    %29 = vector.broadcast %cst_4 : f32 to vector<8x50xf32>
    %30 = vector.broadcast %cst_5 : f32 to vector<8x50xf32>
    %31 = arith.select %28, %29, %30 : vector<8x50xi1>, vector<8x50xf32>
    %32 = arith.addf %22, %31 : vector<8x50xf32>
    %c3_i32 = arith.constant 3 : i32
    %33 = vector.broadcast %c3_i32 : i32 to vector<8x50xi32>
    %34 = arith.cmpi eq, %0, %33 : vector<8x50xi32>
    %c3 = arith.constant 3 : index
    %35 = memref.load %arg0[%c3] : memref<8xi32, #tpu.memory_space<smem>>
    %36 = vector.broadcast %35 : i32 to vector<8x50xi32>
    %37 = arith.cmpi eq, %1, %36 : vector<8x50xi32>
    %38 = arith.andi %34, %37 : vector<8x50xi1>
    %cst_6 = arith.constant 1.000000e+00 : f32
    %cst_7 = arith.constant 0.000000e+00 : f32
    %39 = vector.broadcast %cst_6 : f32 to vector<8x50xf32>
    %40 = vector.broadcast %cst_7 : f32 to vector<8x50xf32>
    %41 = arith.select %38, %39, %40 : vector<8x50xi1>, vector<8x50xf32>
    %42 = arith.addf %32, %41 : vector<8x50xf32>
    %c4_i32 = arith.constant 4 : i32
    %43 = vector.broadcast %c4_i32 : i32 to vector<8x50xi32>
    %44 = arith.cmpi eq, %0, %43 : vector<8x50xi32>
    %c4 = arith.constant 4 : index
    %45 = memref.load %arg0[%c4] : memref<8xi32, #tpu.memory_space<smem>>
    %46 = vector.broadcast %45 : i32 to vector<8x50xi32>
    %47 = arith.cmpi eq, %1, %46 : vector<8x50xi32>
    %48 = arith.andi %44, %47 : vector<8x50xi1>
    %cst_8 = arith.constant 1.000000e+00 : f32
    %cst_9 = arith.constant 0.000000e+00 : f32
    %49 = vector.broadcast %cst_8 : f32 to vector<8x50xf32>
    %50 = vector.broadcast %cst_9 : f32 to vector<8x50xf32>
    %51 = arith.select %48, %49, %50 : vector<8x50xi1>, vector<8x50xf32>
    %52 = arith.addf %42, %51 : vector<8x50xf32>
    %c5_i32 = arith.constant 5 : i32
    %53 = vector.broadcast %c5_i32 : i32 to vector<8x50xi32>
    %54 = arith.cmpi eq, %0, %53 : vector<8x50xi32>
    %c5 = arith.constant 5 : index
    %55 = memref.load %arg0[%c5] : memref<8xi32, #tpu.memory_space<smem>>
    %56 = vector.broadcast %55 : i32 to vector<8x50xi32>
    %57 = arith.cmpi eq, %1, %56 : vector<8x50xi32>
    %58 = arith.andi %54, %57 : vector<8x50xi1>
    %cst_10 = arith.constant 1.000000e+00 : f32
    %cst_11 = arith.constant 0.000000e+00 : f32
    %59 = vector.broadcast %cst_10 : f32 to vector<8x50xf32>
    %60 = vector.broadcast %cst_11 : f32 to vector<8x50xf32>
    %61 = arith.select %58, %59, %60 : vector<8x50xi1>, vector<8x50xf32>
    %62 = arith.addf %52, %61 : vector<8x50xf32>
    %c6_i32 = arith.constant 6 : i32
    %63 = vector.broadcast %c6_i32 : i32 to vector<8x50xi32>
    %64 = arith.cmpi eq, %0, %63 : vector<8x50xi32>
    %c6 = arith.constant 6 : index
    %65 = memref.load %arg0[%c6] : memref<8xi32, #tpu.memory_space<smem>>
    %66 = vector.broadcast %65 : i32 to vector<8x50xi32>
    %67 = arith.cmpi eq, %1, %66 : vector<8x50xi32>
    %68 = arith.andi %64, %67 : vector<8x50xi1>
    %cst_12 = arith.constant 1.000000e+00 : f32
    %cst_13 = arith.constant 0.000000e+00 : f32
    %69 = vector.broadcast %cst_12 : f32 to vector<8x50xf32>
    %70 = vector.broadcast %cst_13 : f32 to vector<8x50xf32>
    %71 = arith.select %68, %69, %70 : vector<8x50xi1>, vector<8x50xf32>
    %72 = arith.addf %62, %71 : vector<8x50xf32>
    %c7_i32 = arith.constant 7 : i32
    %73 = vector.broadcast %c7_i32 : i32 to vector<8x50xi32>
    %74 = arith.cmpi eq, %0, %73 : vector<8x50xi32>
    %c7 = arith.constant 7 : index
    %75 = memref.load %arg0[%c7] : memref<8xi32, #tpu.memory_space<smem>>
    %76 = vector.broadcast %75 : i32 to vector<8x50xi32>
    %77 = arith.cmpi eq, %1, %76 : vector<8x50xi32>
    %78 = arith.andi %74, %77 : vector<8x50xi1>
    %cst_14 = arith.constant 1.000000e+00 : f32
    %cst_15 = arith.constant 0.000000e+00 : f32
    %79 = vector.broadcast %cst_14 : f32 to vector<8x50xf32>
    %80 = vector.broadcast %cst_15 : f32 to vector<8x50xf32>
    %81 = arith.select %78, %79, %80 : vector<8x50xi1>, vector<8x50xf32>
    %82 = arith.addf %72, %81 : vector<8x50xf32>
    %c0_16 = arith.constant 0 : index
    %c0_17 = arith.constant 0 : index
    %83 = vector.load %arg1[%c0_16, %c0_17] : memref<50x32xf32, #tpu.memory_space<vmem>>, vector<50x32xf32>
    %cst_18 = arith.constant dense<0.000000e+00> : vector<8x32xf32>
    %84 = tpu.matmul %82, %83, %cst_18 {dimension_numbers = #tpu.dot_dimension_numbers<[1], [0], [0], [1], [0, 0, 1, 1], [], []>, precision = #tpu.contract_precision<fp32>} : vector<8x50xf32>, vector<50x32xf32>, vector<8x32xf32> -> vector<8x32xf32>
    %c0_19 = arith.constant 0 : index
    %c0_20 = arith.constant 0 : index
    %85 = vector.load %arg11[%c0_19, %c0_20] : memref<8x64xf32, #tpu.memory_space<vmem>>, vector<8x32xf32>
    tpu.vector_store %arg11[%c0_19, %c0_20], %84 {strides = array<i32>} : memref<8x64xf32, #tpu.memory_space<vmem>>, vector<8x32xf32>,
    %c0_21 = arith.constant 0 : index
    %c0_22 = arith.constant 0 : index
    %c0_23 = arith.constant 0 : index
    %86 = vector.load %arg7[%c0_21, %c0_22, %c0_23] : memref<2x8x32xf32, #tpu.memory_space<vmem>>, vector<1x8x32xf32>
    %87 = vector.shape_cast %86 : vector<1x8x32xf32> to vector<8x32xf32>
    %c0_24 = arith.constant 0 : index
    %c0_25 = arith.constant 0 : index
    %c0_26 = arith.constant 0 : index
    %88 = vector.load %arg6[%c0_24, %c0_25, %c0_26] : memref<2x8x32xf32, #tpu.memory_space<vmem>>, vector<1x8x32xf32>
    %89 = vector.shape_cast %88 : vector<1x8x32xf32> to vector<8x32xf32>
    %c0_27 = arith.constant 0 : index
    %c32 = arith.constant 32 : index
    %90 = vector.load %arg11[%c0_27, %c32] : memref<8x64xf32, #tpu.memory_space<vmem>>, vector<8x32xf32>
    tpu.vector_store %arg11[%c0_27, %c32], %89 {strides = array<i32>} : memref<8x64xf32, #tpu.memory_space<vmem>>, vector<8x32xf32>,
    %c0_28 = arith.constant 0 : index
    %c0_29 = arith.constant 0 : index
    %91 = vector.load %arg11[%c0_28, %c0_29] : memref<8x64xf32, #tpu.memory_space<vmem>>, vector<8x64xf32>
    %c0_30 = arith.constant 0 : index
    %c0_31 = arith.constant 0 : index
    %c0_32 = arith.constant 0 : index
    %92 = vector.load %arg2[%c0_30, %c0_31, %c0_32] : memref<2x64x128xf32, #tpu.memory_space<vmem>>, vector<1x64x128xf32>
    %93 = vector.shape_cast %92 : vector<1x64x128xf32> to vector<64x128xf32>
    %cst_33 = arith.constant dense<0.000000e+00> : vector<8x128xf32>
    %94 = tpu.matmul %91, %93, %cst_33 {dimension_numbers = #tpu.dot_dimension_numbers<[1], [0], [0], [1], [0, 0, 1, 1], [], []>, precision = #tpu.contract_precision<fp32>} : vector<8x64xf32>, vector<64x128xf32>, vector<8x128xf32> -> vector<8x128xf32>
    %c0_34 = arith.constant 0 : index
    %c0_35 = arith.constant 0 : index
    %c0_36 = arith.constant 0 : index
    %95 = vector.load %arg3[%c0_34, %c0_35, %c0_36] : memref<2x1x128xf32, #tpu.memory_space<vmem>>, vector<1x1x128xf32>
    %96 = vector.shape_cast %95 : vector<1x1x128xf32> to vector<1x128xf32>
    %97 = vector.broadcast %96 : vector<1x128xf32> to vector<8x128xf32>
    %98 = arith.addf %94, %97 : vector<8x128xf32>
    %99 = vector.extract_strided_slice %98 {offsets = [0, 0], sizes = [8, 32], strides = [1, 1]} : vector<8x128xf32> to vector<8x32xf32>
    %100 = arith.negf %99 : vector<8x32xf32>
    %101 = math.exp %100 : vector<8x32xf32>
    %cst_37 = arith.constant 1.000000e+00 : f32
    %102 = vector.broadcast %cst_37 : f32 to vector<8x32xf32>
    %103 = arith.addf %102, %101 : vector<8x32xf32>
    %104 = arith.divf %102, %103 : vector<8x32xf32>
    %105 = vector.extract_strided_slice %98 {offsets = [0, 32], sizes = [8, 32], strides = [1, 1]} : vector<8x128xf32> to vector<8x32xf32>
    %106 = arith.negf %105 : vector<8x32xf32>
    %107 = math.exp %106 : vector<8x32xf32>
    %cst_38 = arith.constant 1.000000e+00 : f32
    %108 = vector.broadcast %cst_38 : f32 to vector<8x32xf32>
    %109 = arith.addf %108, %107 : vector<8x32xf32>
    %110 = arith.divf %108, %109 : vector<8x32xf32>
    %111 = vector.extract_strided_slice %98 {offsets = [0, 64], sizes = [8, 32], strides = [1, 1]} : vector<8x128xf32> to vector<8x32xf32>
    %112 = math.tanh %111 : vector<8x32xf32>
    %113 = vector.extract_strided_slice %98 {offsets = [0, 96], sizes = [8, 32], strides = [1, 1]} : vector<8x128xf32> to vector<8x32xf32>
    %114 = arith.negf %113 : vector<8x32xf32>
    %115 = math.exp %114 : vector<8x32xf32>
    %cst_39 = arith.constant 1.000000e+00 : f32
    %116 = vector.broadcast %cst_39 : f32 to vector<8x32xf32>
    %117 = arith.addf %116, %115 : vector<8x32xf32>
    %118 = arith.divf %116, %117 : vector<8x32xf32>
    %119 = arith.mulf %110, %87 : vector<8x32xf32>
    %120 = arith.mulf %104, %112 : vector<8x32xf32>
    %121 = arith.addf %119, %120 : vector<8x32xf32>
    %122 = math.tanh %121 : vector<8x32xf32>
    %123 = arith.mulf %118, %122 : vector<8x32xf32>
    %c0_40 = arith.constant 0 : index
    %c0_41 = arith.constant 0 : index
    %c0_42 = arith.constant 0 : index
    %124 = vector.load %arg9[%c0_40, %c0_41, %c0_42] : memref<2x8x32xf32, #tpu.memory_space<vmem>>, vector<1x8x32xf32>
    %125 = vector.shape_cast %124 : vector<1x8x32xf32> to vector<8x32xf32>
    %126 = vector.shape_cast %123 : vector<8x32xf32> to vector<1x8x32xf32>
    tpu.vector_store %arg9[%c0_40, %c0_41, %c0_42], %126 {strides = array<i32>} : memref<2x8x32xf32, #tpu.memory_space<vmem>>, vector<1x8x32xf32>,
    %c0_43 = arith.constant 0 : index
    %c0_44 = arith.constant 0 : index
    %c0_45 = arith.constant 0 : index
    %127 = vector.load %arg10[%c0_43, %c0_44, %c0_45] : memref<2x8x32xf32, #tpu.memory_space<vmem>>, vector<1x8x32xf32>
    %128 = vector.shape_cast %127 : vector<1x8x32xf32> to vector<8x32xf32>
    %129 = vector.shape_cast %121 : vector<8x32xf32> to vector<1x8x32xf32>
    tpu.vector_store %arg10[%c0_43, %c0_44, %c0_45], %129 {strides = array<i32>} : memref<2x8x32xf32, #tpu.memory_space<vmem>>, vector<1x8x32xf32>,
    %c0_46 = arith.constant 0 : index
    %c0_47 = arith.constant 0 : index
    %130 = vector.load %arg11[%c0_46, %c0_47] : memref<8x64xf32, #tpu.memory_space<vmem>>, vector<8x32xf32>
    tpu.vector_store %arg11[%c0_46, %c0_47], %123 {strides = array<i32>} : memref<8x64xf32, #tpu.memory_space<vmem>>, vector<8x32xf32>,
    %c1_48 = arith.constant 1 : index
    %c0_49 = arith.constant 0 : index
    %c0_50 = arith.constant 0 : index
    %131 = vector.load %arg7[%c1_48, %c0_49, %c0_50] : memref<2x8x32xf32, #tpu.memory_space<vmem>>, vector<1x8x32xf32>
    %132 = vector.shape_cast %131 : vector<1x8x32xf32> to vector<8x32xf32>
    %c1_51 = arith.constant 1 : index
    %c0_52 = arith.constant 0 : index
    %c0_53 = arith.constant 0 : index
    %133 = vector.load %arg6[%c1_51, %c0_52, %c0_53] : memref<2x8x32xf32, #tpu.memory_space<vmem>>, vector<1x8x32xf32>
    %134 = vector.shape_cast %133 : vector<1x8x32xf32> to vector<8x32xf32>
    %c0_54 = arith.constant 0 : index
    %c32_55 = arith.constant 32 : index
    %135 = vector.load %arg11[%c0_54, %c32_55] : memref<8x64xf32, #tpu.memory_space<vmem>>, vector<8x32xf32>
    tpu.vector_store %arg11[%c0_54, %c32_55], %134 {strides = array<i32>} : memref<8x64xf32, #tpu.memory_space<vmem>>, vector<8x32xf32>,
    %c0_56 = arith.constant 0 : index
    %c0_57 = arith.constant 0 : index
    %136 = vector.load %arg11[%c0_56, %c0_57] : memref<8x64xf32, #tpu.memory_space<vmem>>, vector<8x64xf32>
    %c1_58 = arith.constant 1 : index
    %c0_59 = arith.constant 0 : index
    %c0_60 = arith.constant 0 : index
    %137 = vector.load %arg2[%c1_58, %c0_59, %c0_60] : memref<2x64x128xf32, #tpu.memory_space<vmem>>, vector<1x64x128xf32>
    %138 = vector.shape_cast %137 : vector<1x64x128xf32> to vector<64x128xf32>
    %cst_61 = arith.constant dense<0.000000e+00> : vector<8x128xf32>
    %139 = tpu.matmul %136, %138, %cst_61 {dimension_numbers = #tpu.dot_dimension_numbers<[1], [0], [0], [1], [0, 0, 1, 1], [], []>, precision = #tpu.contract_precision<fp32>} : vector<8x64xf32>, vector<64x128xf32>, vector<8x128xf32> -> vector<8x128xf32>
    %c1_62 = arith.constant 1 : index
    %c0_63 = arith.constant 0 : index
    %c0_64 = arith.constant 0 : index
    %140 = vector.load %arg3[%c1_62, %c0_63, %c0_64] : memref<2x1x128xf32, #tpu.memory_space<vmem>>, vector<1x1x128xf32>
    %141 = vector.shape_cast %140 : vector<1x1x128xf32> to vector<1x128xf32>
    %142 = vector.broadcast %141 : vector<1x128xf32> to vector<8x128xf32>
    %143 = arith.addf %139, %142 : vector<8x128xf32>
    %144 = vector.extract_strided_slice %143 {offsets = [0, 0], sizes = [8, 32], strides = [1, 1]} : vector<8x128xf32> to vector<8x32xf32>
    %145 = arith.negf %144 : vector<8x32xf32>
    %146 = math.exp %145 : vector<8x32xf32>
    %cst_65 = arith.constant 1.000000e+00 : f32
    %147 = vector.broadcast %cst_65 : f32 to vector<8x32xf32>
    %148 = arith.addf %147, %146 : vector<8x32xf32>
    %149 = arith.divf %147, %148 : vector<8x32xf32>
    %150 = vector.extract_strided_slice %143 {offsets = [0, 32], sizes = [8, 32], strides = [1, 1]} : vector<8x128xf32> to vector<8x32xf32>
    %151 = arith.negf %150 : vector<8x32xf32>
    %152 = math.exp %151 : vector<8x32xf32>
    %cst_66 = arith.constant 1.000000e+00 : f32
    %153 = vector.broadcast %cst_66 : f32 to vector<8x32xf32>
    %154 = arith.addf %153, %152 : vector<8x32xf32>
    %155 = arith.divf %153, %154 : vector<8x32xf32>
    %156 = vector.extract_strided_slice %143 {offsets = [0, 64], sizes = [8, 32], strides = [1, 1]} : vector<8x128xf32> to vector<8x32xf32>
    %157 = math.tanh %156 : vector<8x32xf32>
    %158 = vector.extract_strided_slice %143 {offsets = [0, 96], sizes = [8, 32], strides = [1, 1]} : vector<8x128xf32> to vector<8x32xf32>
    %159 = arith.negf %158 : vector<8x32xf32>
    %160 = math.exp %159 : vector<8x32xf32>
    %cst_67 = arith.constant 1.000000e+00 : f32
    %161 = vector.broadcast %cst_67 : f32 to vector<8x32xf32>
    %162 = arith.addf %161, %160 : vector<8x32xf32>
    %163 = arith.divf %161, %162 : vector<8x32xf32>
    %164 = arith.mulf %155, %132 : vector<8x32xf32>
    %165 = arith.mulf %149, %157 : vector<8x32xf32>
    %166 = arith.addf %164, %165 : vector<8x32xf32>
    %167 = math.tanh %166 : vector<8x32xf32>
    %168 = arith.mulf %163, %167 : vector<8x32xf32>
    %c1_68 = arith.constant 1 : index
    %c0_69 = arith.constant 0 : index
    %c0_70 = arith.constant 0 : index
    %169 = vector.load %arg9[%c1_68, %c0_69, %c0_70] : memref<2x8x32xf32, #tpu.memory_space<vmem>>, vector<1x8x32xf32>
    %170 = vector.shape_cast %169 : vector<1x8x32xf32> to vector<8x32xf32>
    %171 = vector.shape_cast %168 : vector<8x32xf32> to vector<1x8x32xf32>
    tpu.vector_store %arg9[%c1_68, %c0_69, %c0_70], %171 {strides = array<i32>} : memref<2x8x32xf32, #tpu.memory_space<vmem>>, vector<1x8x32xf32>,
    %c1_71 = arith.constant 1 : index
    %c0_72 = arith.constant 0 : index
    %c0_73 = arith.constant 0 : index
    %172 = vector.load %arg10[%c1_71, %c0_72, %c0_73] : memref<2x8x32xf32, #tpu.memory_space<vmem>>, vector<1x8x32xf32>
    %173 = vector.shape_cast %172 : vector<1x8x32xf32> to vector<8x32xf32>
    %174 = vector.shape_cast %166 : vector<8x32xf32> to vector<1x8x32xf32>
    tpu.vector_store %arg10[%c1_71, %c0_72, %c0_73], %174 {strides = array<i32>} : memref<2x8x32xf32, #tpu.memory_space<vmem>>, vector<1x8x32xf32>,
    %c0_74 = arith.constant 0 : index
    %c0_75 = arith.constant 0 : index
    %175 = vector.load %arg11[%c0_74, %c0_75] : memref<8x64xf32, #tpu.memory_space<vmem>>, vector<8x32xf32>
    tpu.vector_store %arg11[%c0_74, %c0_75], %168 {strides = array<i32>} : memref<8x64xf32, #tpu.memory_space<vmem>>, vector<8x32xf32>,
    %c0_76 = arith.constant 0 : index
    %c0_77 = arith.constant 0 : index
    %176 = vector.load %arg4[%c0_76, %c0_77] : memref<32x128xf32, #tpu.memory_space<vmem>>, vector<32x128xf32>
    %cst_78 = arith.constant dense<0.000000e+00> : vector<8x128xf32>
    %177 = tpu.matmul %168, %176, %cst_78 {dimension_numbers = #tpu.dot_dimension_numbers<[1], [0], [0], [1], [0, 0, 1, 1], [], []>, precision = #tpu.contract_precision<fp32>} : vector<8x32xf32>, vector<32x128xf32>, vector<8x128xf32> -> vector<8x128xf32>
    %c0_79 = arith.constant 0 : index
    %c0_80 = arith.constant 0 : index
    %178 = vector.load %arg5[%c0_79, %c0_80] : memref<1x128xf32, #tpu.memory_space<vmem>>, vector<1x128xf32>
    %179 = vector.broadcast %178 : vector<1x128xf32> to vector<8x128xf32>
    %180 = arith.addf %177, %179 : vector<8x128xf32>
    %c0_81 = arith.constant 0 : index
    %c0_82 = arith.constant 0 : index
    %181 = vector.load %arg8[%c0_81, %c0_82] : memref<8x128xf32, #tpu.memory_space<vmem>>, vector<8x128xf32>
    tpu.vector_store %arg8[%c0_81, %c0_82], %180 {strides = array<i32>} : memref<8x128xf32, #tpu.memory_space<vmem>>, vector<8x128xf32>,
    return
  }
}

</mosaic_0001>

<llo_original>
// kernel: decoder_forward.1
$region0: #{decoder_forward.1}
  #allocation0 [shape = 'u32[]', space=smem, size = 0x4, offset = 0x4, fixed_abs, tag = 'smem constant byte address 0x4 - core index']
  #allocation1 [shape = 'u32[144,128]{1,0:T(1,128)}', space=vmem, size = 0x12000, scoped, tag = 'internal scratch']
  #allocation2 [shape = 'f32[8,64]{1,0:T(8,128)}', space=vmem, size = 0x1000, scoped, tag = 'scratch operand']
  %s0 = inlined_call_operand.vmem [shape: s32[8], index: 0, kind: input, shape index: {}]
  %s1 = inlined_call_operand.vmem [shape: f32[50,32], index: 1, kind: input, shape index: {}]
  %s2 = inlined_call_operand.vmem [shape: f32[2,64,128], index: 2, kind: input, shape index: {}]
  %s3 = inlined_call_operand.vmem [shape: f32[2,1,128], index: 3, kind: input, shape index: {}]
  %s4 = inlined_call_operand.hbm [shape: f32[32,128], index: 4, kind: input, shape index: {}]
  %s5 = inlined_call_operand.vmem [shape: f32[1,128], index: 5, kind: input, shape index: {}]
  %s6 = inlined_call_operand.vmem [shape: f32[2,8,32], index: 6, kind: input, shape index: {}, may-alias: {6,9}]
  %s7 = inlined_call_operand.vmem [shape: f32[2,8,32], index: 7, kind: input, shape index: {}, may-alias: {7,10}]
  %s8 = inlined_call_operand.vmem [shape: f32[8,128], index: 8, kind: output, shape index: {0}]
  %s9 = inlined_call_operand.vmem [shape: f32[2,8,32], index: 9, kind: output, shape index: {1}, may-alias: {6,9}]
  %s10 = inlined_call_operand.vmem [shape: f32[2,8,32], index: 10, kind: output, shape index: {2}, may-alias: {7,10}]
  %11 = xla_tuple %s8, %s9, %s10
  %s12 = sld [smem:[#allocation0]]
  $region66: #{decoder_forward.1} parent=0
    _
  %s14 = ssub.s32 1, %s12
  %s15 = scalar_select 0, %s14, %s12
  $region1: #{decoder_forward.1} parent=0
    #allocation3 [shape = 'u8[512]{0}', space=smem, size = 0x200, scoped, tag = 'input window, operand 0, single buffered']
    #allocation4 [shape = 's32[1]{0}', space=sflag, size = 0x4, scoped, tag = 'scoped memory for decoder_forward.1']
    #allocation5 [shape = 's32[1]{0}', space=sflag, size = 0x4, scoped, tag = 'scoped memory for decoder_forward.1']
    #allocation6 [shape = 'u8[16384]{0}', space=vmem, size = 0x4000, scoped, tag = 'input window, operand 4, single buffered']
    %16 = vsyncpa [#allocation5], 0
    %17 = vsyncpa [#allocation4], 0
    // Predicated region
    $region2: #{decoder_forward.1} parent=1 // pred_check
      _
    $region3: #{decoder_forward.1} parent=1 // pred_check_branch
      %19 = sbr.rel (0) target = $region5
    $region4: #{decoder_forward.1} parent=1 // pred_region
      %s21 = ssub.s32 16, 16
      %22 = vsyncadd [#allocation5], %s21
      %s24 = sshll.u32 %s0, 4
      %s25 = int_to_ptr.vmem [resolvable:$true] %s24
      %27 = dma.vmem_to_smem %s25, 16, [#allocation3], [#allocation5]
    $region5: #{decoder_forward.1} parent=1 // pred_fallthru
      _
    // Predicated region
    $region6: #{decoder_forward.1} parent=1 // pred_check
      _
    $region7: #{decoder_forward.1} parent=1 // pred_check_branch
      %29 = sbr.rel (0) target = $region9
    $region8: #{decoder_forward.1} parent=1 // pred_region
      _
    $region9: #{decoder_forward.1} parent=1 // pred_fallthru
      _
    // Predicated region
    $region10: #{decoder_forward.1} parent=1 // pred_check
      _
    $region11: #{decoder_forward.1} parent=1 // pred_check_branch
      %31 = sbr.rel (0) target = $region13
    $region12: #{decoder_forward.1} parent=1 // pred_region
      _
    $region13: #{decoder_forward.1} parent=1 // pred_fallthru
      _
    // Predicated region
    $region14: #{decoder_forward.1} parent=1 // pred_check
      _
    $region15: #{decoder_forward.1} parent=1 // pred_check_branch
      %33 = sbr.rel (0) target = $region17
    $region16: #{decoder_forward.1} parent=1 // pred_region
      _
    $region17: #{decoder_forward.1} parent=1 // pred_fallthru
      _
    // Predicated region
    $region18: #{decoder_forward.1} parent=1 // pred_check
      _
    $region19: #{decoder_forward.1} parent=1 // pred_check_branch
      %35 = sbr.rel (0) target = $region21
    $region20: #{decoder_forward.1} parent=1 // pred_region
      %s37 = ssub.s32 512, 512
      %38 = vsyncadd [#allocation4], %s37
      %s39 = sshll.u32 [#allocation6], 4
      %s40 = int_to_ptr.vmem [resolvable:$true] %s39
      %45 = dma.hbm_to_vmem [thread:$0]  %s4, 512, %s40, [#allocation4], 128, 128, 8
    $region21: #{decoder_forward.1} parent=1 // pred_fallthru
      _
    // Predicated region
    $region22: #{decoder_forward.1} parent=1 // pred_check
      _
    $region23: #{decoder_forward.1} parent=1 // pred_check_branch
      %47 = sbr.rel (0) target = $region25
    $region24: #{decoder_forward.1} parent=1 // pred_region
      _
    $region25: #{decoder_forward.1} parent=1 // pred_fallthru
      _
    // Predicated region
    $region26: #{decoder_forward.1} parent=1 // pred_check
      _
    $region27: #{decoder_forward.1} parent=1 // pred_check_branch
      %49 = sbr.rel (0) target = $region29
    $region28: #{decoder_forward.1} parent=1 // pred_region
      _
    $region29: #{decoder_forward.1} parent=1 // pred_fallthru
      _
    // Predicated region
    $region30: #{decoder_forward.1} parent=1 // pred_check
      _
    $region31: #{decoder_forward.1} parent=1 // pred_check_branch
      %51 = sbr.rel (0) target = $region33
    $region32: #{decoder_forward.1} parent=1 // pred_region
      _
    $region33: #{decoder_forward.1} parent=1 // pred_fallthru
      _
    // Predicated region
    $region34: #{decoder_forward.1} parent=1 // pred_check
      _
    $region35: #{decoder_forward.1} parent=1 // pred_check_branch
      %53 = sbr.rel (0) target = $region37
    $region36: #{decoder_forward.1} parent=1 // pred_region
      %54 = dma.done [#allocation5], 16
    $region37: #{decoder_forward.1} parent=1 // pred_fallthru
      _
    // Predicated region
    $region38: #{decoder_forward.1} parent=1 // pred_check
      _
    $region39: #{decoder_forward.1} parent=1 // pred_check_branch
      %56 = sbr.rel (0) target = $region41
    $region40: #{decoder_forward.1} parent=1 // pred_region
      %57 = dma.done [#allocation4], 512
    $region41: #{decoder_forward.1} parent=1 // pred_fallthru
      _
    %58 = sfence
    %v59 = vlaneseq
    %v60 = vshrl.u32 %v59, 7
    %v61 = vlaneseq
    %v62 = vand.u32 %v61, 127
    %vm63 = vcmp.eq.s32.totalorder %v60, 0
    %s64 = sld [smem:[#allocation3]]
    %v65 = vstv %s64
    %vm66 = vcmp.eq.s32.totalorder %v62, %v65
    %vm67 = vmand %vm63, %vm66
    %v68 = vsel %vm67, 1.0, 0.0
    %v69 = vadd.f32 %v68, 0.0
    %vm70 = vcmp.eq.s32.totalorder %v60, 1
    %s71 = sld [smem:[#allocation3 + $0x1]]
    %v72 = vstv %s71
    %vm73 = vcmp.eq.s32.totalorder %v62, %v72
    %vm74 = vmand %vm70, %vm73
    %v75 = vsel %vm74, 1.0, 0.0
    %v76 = vadd.f32 %v69, %v75
    %vm77 = vcmp.eq.s32.totalorder %v60, 2
    %s78 = sld [smem:[#allocation3 + $0x2]]
    %v79 = vstv %s78
    %vm80 = vcmp.eq.s32.totalorder %v62, %v79
    %vm81 = vmand %vm77, %vm80
    %v82 = vsel %vm81, 1.0, 0.0
    %v83 = vadd.f32 %v76, %v82
    %vm84 = vcmp.eq.s32.totalorder %v60, 3
    %s85 = sld [smem:[#allocation3 + $0x3]]
    %v86 = vstv %s85
    %vm87 = vcmp.eq.s32.totalorder %v62, %v86
    %vm88 = vmand %vm84, %vm87
    %v89 = vsel %vm88, 1.0, 0.0
    %v90 = vadd.f32 %v83, %v89
    %vm91 = vcmp.eq.s32.totalorder %v60, 4
    %s92 = sld [smem:[#allocation3 + $0x4]]
    %v93 = vstv %s92
    %vm94 = vcmp.eq.s32.totalorder %v62, %v93
    %vm95 = vmand %vm91, %vm94
    %v96 = vsel %vm95, 1.0, 0.0
    %v97 = vadd.f32 %v90, %v96
    %vm98 = vcmp.eq.s32.totalorder %v60, 5
    %s99 = sld [smem:[#allocation3 + $0x5]]
    %v100 = vstv %s99
    %vm101 = vcmp.eq.s32.totalorder %v62, %v100
    %vm102 = vmand %vm98, %vm101
    %v103 = vsel %vm102, 1.0, 0.0
    %v104 = vadd.f32 %v97, %v103
    %vm105 = vcmp.eq.s32.totalorder %v60, 6
    %s106 = sld [smem:[#allocation3 + $0x6]]
    %v107 = vstv %s106
    %vm108 = vcmp.eq.s32.totalorder %v62, %v107
    %vm109 = vmand %vm105, %vm108
    %v110 = vsel %vm109, 1.0, 0.0
    %v111 = vadd.f32 %v104, %v110
    %vm112 = vcmp.eq.s32.totalorder %v60, 7
    %s113 = sld [smem:[#allocation3 + $0x7]]
    %v114 = vstv %s113
    %vm115 = vcmp.eq.s32.totalorder %v62, %v114
    %vm116 = vmand %vm112, %vm115
    %v117 = vsel %vm116, 1.0, 0.0
    %v118 = vadd.f32 %v111, %v117
    %v119 = vld [vmem:[%s1] sm:$0xff]
    %v120 = vld [vmem:[%s1 + $0x8] sm:$0xff]
    %v121 = vld [vmem:[%s1 + $0x10] sm:$0xff]
    %v122 = vld [vmem:[%s1 + $0x18] sm:$0xff]
    %v123 = vld [vmem:[%s1 + $0x20] sm:$0xff]
    %v124 = vld [vmem:[%s1 + $0x28] sm:$0xff]
    %v125 = vld [vmem:[%s1 + $0x30] sm:$0x3]
    %vm126 = vcmask 408576
    %v128 = vsel %vm126, %v118, 0
    %vm130 = vcmask 1041408
    %v132 = vsel %vm130, %v125, 0
    %134 = vmatprep.subr.mxu0 0.0
    %135 = vmatpush1.msra.mxu0 0.0
    %136 = vmatprep.subr.mxu0 0.0
    %137 = vmatpush1.msra.mxu0 0.0
    %138 = vmatprep.subr.mxu0 0.0
    %139 = vmatpush1.msra.mxu0 0.0
    %140 = vmatprep.subr.mxu0 0.0
    %141 = vmatpush1.msra.mxu0 0.0
    %142 = vmatprep.subr.mxu0 0.0
    %143 = vmatpush1.msra.mxu0 0.0
    %144 = vmatprep.subr.mxu0 0.0
    %145 = vmatpush1.msra.mxu0 0.0
    %146 = vmatprep.subr.mxu0 0.0
    %147 = vmatpush1.msra.mxu0 0.0
    %148 = vmatprep.subr.mxu0 0.0
    %149 = vmatpush1.msra.mxu0 0.0
    %150 = vmatprep.subr.mxu0 0.0
    %151 = vmatpush1.msra.mxu0 0.0
    %152 = vmatprep.subr.mxu0 0.0
    %v153 = vand.u32 %v132, 4294901760
    %154 = vmatpush1.msra.mxu0 %v153
    %155 = vmatprep.subr.mxu0 0.0
    %v156 = vand.u32 %v124, 4294901760
    %157 = vmatpush1.msra.mxu0 %v156
    %158 = vmatprep.subr.mxu0 0.0
    %v159 = vand.u32 %v123, 4294901760
    %160 = vmatpush1.msra.mxu0 %v159
    %161 = vmatprep.subr.mxu0 0.0
    %v162 = vand.u32 %v122, 4294901760
    %163 = vmatpush1.msra.mxu0 %v162
    %164 = vmatprep.subr.mxu0 0.0
    %v165 = vand.u32 %v121, 4294901760
    %166 = vmatpush1.msra.mxu0 %v165
    %167 = vmatprep.subr.mxu0 0.0
    %v168 = vand.u32 %v120, 4294901760
    %169 = vmatpush1.msra.mxu0 %v168
    %170 = vmatprep.subr.mxu0 0.0
    %v171 = vand.u32 %v119, 4294901760
    %172 = vmatpush1.msra.mxu0 %v171
    %173 = vmatprep.subr.mxu0 0.0
    %174 = vmatpush2.msra.mxu0 0.0
    %175 = vmatprep.subr.mxu0 0.0
    %176 = vmatpush2.msra.mxu0 0.0
    %177 = vmatprep.subr.mxu0 0.0
    %178 = vmatpush2.msra.mxu0 0.0
    %179 = vmatprep.subr.mxu0 0.0
    %180 = vmatpush2.msra.mxu0 0.0
    %181 = vmatprep.subr.mxu0 0.0
    %182 = vmatpush2.msra.mxu0 0.0
    %183 = vmatprep.subr.mxu0 0.0
    %184 = vmatpush2.msra.mxu0 0.0
    %185 = vmatprep.subr.mxu0 0.0
    %186 = vmatpush2.msra.mxu0 0.0
    %187 = vmatprep.subr.mxu0 0.0
    %188 = vmatpush2.msra.mxu0 0.0
    %189 = vmatprep.subr.mxu0 0.0
    %190 = vmatpush2.msra.mxu0 0.0
    %191 = vmatprep.subr.mxu0 0.0
    %192 = vmatpush2.msra.mxu0 0.0
    %193 = vmatprep.subr.mxu0 0.0
    %194 = vmatpush2.msra.mxu0 0.0
    %195 = vmatprep.subr.mxu0 0.0
    %196 = vmatpush2.msra.mxu0 0.0
    %197 = vmatprep.subr.mxu0 0.0
    %198 = vmatpush2.msra.mxu0 0.0
    %199 = vmatprep.subr.mxu0 0.0
    %200 = vmatpush2.msra.mxu0 0.0
    %201 = vmatprep.subr.mxu0 0.0
    %202 = vmatpush2.msra.mxu0 0.0
    %203 = vmatprep.subr.mxu0 0.0
    %204 = vmatpush2.msra.mxu0 0.0
    %205 = vmatprep.mubr.f32.mxu0 0.0
    %v206 = vand.u32 %v128, 4294901760
    %v207 = vsub.f32 %v128, %v206
    %v208 = vand.u32 %v207, 4294901760
    %v209 = vsub.f32 %v207, %v208
    %v210 = vand.u32 %v209, 4294901760
    %211 = vmatmul.mubr.f32.gmra.mxu0 %v210
    %v212 = vpop.f32.mrf.mxu0
    %v213 = vadd.f32 0.0, %v212
    %v214 = vpop.f32.mrf.mxu0
    %215 = vdwg.mxu0
    %216 = vmatprep.subr.mxu0 0.0
    %217 = vmatpush1.msra.mxu0 0.0
    %218 = vmatprep.subr.mxu0 0.0
    %219 = vmatpush1.msra.mxu0 0.0
    %220 = vmatprep.subr.mxu0 0.0
    %221 = vmatpush1.msra.mxu0 0.0
    %222 = vmatprep.subr.mxu0 0.0
    %223 = vmatpush1.msra.mxu0 0.0
    %224 = vmatprep.subr.mxu0 0.0
    %225 = vmatpush1.msra.mxu0 0.0
    %226 = vmatprep.subr.mxu0 0.0
    %227 = vmatpush1.msra.mxu0 0.0
    %228 = vmatprep.subr.mxu0 0.0
    %229 = vmatpush1.msra.mxu0 0.0
    %230 = vmatprep.subr.mxu0 0.0
    %231 = vmatpush1.msra.mxu0 0.0
    %232 = vmatprep.subr.mxu0 0.0
    %233 = vmatpush1.msra.mxu0 0.0
    %234 = vmatprep.subr.mxu0 0.0
    %v235 = vand.u32 %v132, 4294901760
    %v236 = vsub.f32 %v132, %v235
    %v237 = vand.u32 %v236, 4294901760
    %v238 = vsub.f32 %v236, %v237
    %v239 = vand.u32 %v238, 4294901760
    %240 = vmatpush1.msra.mxu0 %v239
    %241 = vmatprep.subr.mxu0 0.0
    %v242 = vand.u32 %v124, 4294901760
    %v243 = vsub.f32 %v124, %v242
    %v244 = vand.u32 %v243, 4294901760
    %v245 = vsub.f32 %v243, %v244
    %v246 = vand.u32 %v245, 4294901760
    %247 = vmatpush1.msra.mxu0 %v246
    %248 = vmatprep.subr.mxu0 0.0
    %v249 = vand.u32 %v123, 4294901760
    %v250 = vsub.f32 %v123, %v249
    %v251 = vand.u32 %v250, 4294901760
    %v252 = vsub.f32 %v250, %v251
    %v253 = vand.u32 %v252, 4294901760
    %254 = vmatpush1.msra.mxu0 %v253
    %255 = vmatprep.subr.mxu0 0.0
    %v256 = vand.u32 %v122, 4294901760
    %v257 = vsub.f32 %v122, %v256
    %v258 = vand.u32 %v257, 4294901760
    %v259 = vsub.f32 %v257, %v258
    %v260 = vand.u32 %v259, 4294901760
    %261 = vmatpush1.msra.mxu0 %v260
    %262 = vmatprep.subr.mxu0 0.0
    %v263 = vand.u32 %v121, 4294901760
    %v264 = vsub.f32 %v121, %v263
    %v265 = vand.u32 %v264, 4294901760
    %v266 = vsub.f32 %v264, %v265
    %v267 = vand.u32 %v266, 4294901760
    %268 = vmatpush1.msra.mxu0 %v267
    %269 = vmatprep.subr.mxu0 0.0
    %v270 = vand.u32 %v120, 4294901760
    %v271 = vsub.f32 %v120, %v270
    %v272 = vand.u32 %v271, 4294901760
    %v273 = vsub.f32 %v271, %v272
    %v274 = vand.u32 %v273, 4294901760
    %275 = vmatpush1.msra.mxu0 %v274
    %276 = vmatprep.subr.mxu0 0.0
    %v277 = vand.u32 %v119, 4294901760
    %v278 = vsub.f32 %v119, %v277
    %v279 = vand.u32 %v278, 4294901760
    %v280 = vsub.f32 %v278, %v279
    %v281 = vand.u32 %v280, 4294901760
    %282 = vmatpush1.msra.mxu0 %v281
    %283 = vmatprep.subr.mxu0 0.0
    %284 = vmatpush2.msra.mxu0 0.0
    %285 = vmatprep.subr.mxu0 0.0
    %286 = vmatpush2.msra.mxu0 0.0
    %287 = vmatprep.subr.mxu0 0.0
    %288 = vmatpush2.msra.mxu0 0.0
    %289 = vmatprep.subr.mxu0 0.0
    %290 = vmatpush2.msra.mxu0 0.0
    %291 = vmatprep.subr.mxu0 0.0
    %292 = vmatpush2.msra.mxu0 0.0
    %293 = vmatprep.subr.mxu0 0.0
    %294 = vmatpush2.msra.mxu0 0.0
    %295 = vmatprep.subr.mxu0 0.0
    %296 = vmatpush2.msra.mxu0 0.0
    %297 = vmatprep.subr.mxu0 0.0
    %298 = vmatpush2.msra.mxu0 0.0
    %299 = vmatprep.subr.mxu0 0.0
    %300 = vmatpush2.msra.mxu0 0.0
    %301 = vmatprep.subr.mxu0 0.0
    %302 = vmatpush2.msra.mxu0 0.0
    %303 = vmatprep.subr.mxu0 0.0
    %304 = vmatpush2.msra.mxu0 0.0
    %305 = vmatprep.subr.mxu0 0.0
    %306 = vmatpush2.msra.mxu0 0.0
    %307 = vmatprep.subr.mxu0 0.0
    %308 = vmatpush2.msra.mxu0 0.0
    %309 = vmatprep.subr.mxu0 0.0
    %310 = vmatpush2.msra.mxu0 0.0
    %311 = vmatprep.subr.mxu0 0.0
    %312 = vmatpush2.msra.mxu0 0.0
    %313 = vmatprep.subr.mxu0 0.0
    %314 = vmatpush2.msra.mxu0 0.0
    %315 = vmatprep.mubr.f32.mxu0 0.0
    %v316 = vand.u32 %v128, 4294901760
    %317 = vmatmul.mubr.f32.gmra.mxu0 %v316
    %v318 = vpop.f32.mrf.mxu0
    %v319 = vadd.f32 %v213, %v318
    %v320 = vpop.f32.mrf.mxu0
    %321 = vdwg.mxu0
    %322 = vmatprep.subr.mxu0 0.0
    %323 = vmatpush1.msra.mxu0 0.0
    %324 = vmatprep.subr.mxu0 0.0
    %325 = vmatpush1.msra.mxu0 0.0
    %326 = vmatprep.subr.mxu0 0.0
    %327 = vmatpush1.msra.mxu0 0.0
    %328 = vmatprep.subr.mxu0 0.0
    %329 = vmatpush1.msra.mxu0 0.0
    %330 = vmatprep.subr.mxu0 0.0
    %331 = vmatpush1.msra.mxu0 0.0
    %332 = vmatprep.subr.mxu0 0.0
    %333 = vmatpush1.msra.mxu0 0.0
    %334 = vmatprep.subr.mxu0 0.0
    %335 = vmatpush1.msra.mxu0 0.0
    %336 = vmatprep.subr.mxu0 0.0
    %337 = vmatpush1.msra.mxu0 0.0
    %338 = vmatprep.subr.mxu0 0.0
    %339 = vmatpush1.msra.mxu0 0.0
    %340 = vmatprep.subr.mxu0 0.0
    %v341 = vand.u32 %v132, 4294901760
    %v342 = vsub.f32 %v132, %v341
    %343 = vmatpush1.msra.mxu0 %v342
    %344 = vmatprep.subr.mxu0 0.0
    %v345 = vand.u32 %v124, 4294901760
    %v346 = vsub.f32 %v124, %v345
    %347 = vmatpush1.msra.mxu0 %v346
    %348 = vmatprep.subr.mxu0 0.0
    %v349 = vand.u32 %v123, 4294901760
    %v350 = vsub.f32 %v123, %v349
    %351 = vmatpush1.msra.mxu0 %v350
    %352 = vmatprep.subr.mxu0 0.0
    %v353 = vand.u32 %v122, 4294901760
    %v354 = vsub.f32 %v122, %v353
    %355 = vmatpush1.msra.mxu0 %v354
    %356 = vmatprep.subr.mxu0 0.0
    %v357 = vand.u32 %v121, 4294901760
    %v358 = vsub.f32 %v121, %v357
    %359 = vmatpush1.msra.mxu0 %v358
    %360 = vmatprep.subr.mxu0 0.0
    %v361 = vand.u32 %v120, 4294901760
    %v362 = vsub.f32 %v120, %v361
    %363 = vmatpush1.msra.mxu0 %v362
    %364 = vmatprep.subr.mxu0 0.0
    %v365 = vand.u32 %v119, 4294901760
    %v366 = vsub.f32 %v119, %v365
    %367 = vmatpush1.msra.mxu0 %v366
    %368 = vmatprep.subr.mxu0 0.0
    %369 = vmatpush2.msra.mxu0 0.0
    %370 = vmatprep.subr.mxu0 0.0
    %371 = vmatpush2.msra.mxu0 0.0
    %372 = vmatprep.subr.mxu0 0.0
    %373 = vmatpush2.msra.mxu0 0.0
    %374 = vmatprep.subr.mxu0 0.0
    %375 = vmatpush2.msra.mxu0 0.0
    %376 = vmatprep.subr.mxu0 0.0
    %377 = vmatpush2.msra.mxu0 0.0
    %378 = vmatprep.subr.mxu0 0.0
    %379 = vmatpush2.msra.mxu0 0.0
    %380 = vmatprep.subr.mxu0 0.0
    %381 = vmatpush2.msra.mxu0 0.0
    %382 = vmatprep.subr.mxu0 0.0
    %383 = vmatpush2.msra.mxu0 0.0
    %384 = vmatprep.subr.mxu0 0.0
    %385 = vmatpush2.msra.mxu0 0.0
    %386 = vmatprep.subr.mxu0 0.0
    %387 = vmatpush2.msra.mxu0 0.0
    %388 = vmatprep.subr.mxu0 0.0
    %389 = vmatpush2.msra.mxu0 0.0
    %390 = vmatprep.subr.mxu0 0.0
    %391 = vmatpush2.msra.mxu0 0.0
    %392 = vmatprep.subr.mxu0 0.0
    %393 = vmatpush2.msra.mxu0 0.0
    %394 = vmatprep.subr.mxu0 0.0
    %395 = vmatpush2.msra.mxu0 0.0
    %396 = vmatprep.subr.mxu0 0.0
    %397 = vmatpush2.msra.mxu0 0.0
    %398 = vmatprep.subr.mxu0 0.0
    %399 = vmatpush2.msra.mxu0 0.0
    %400 = vmatprep.mubr.f32.mxu0 0.0
    %v401 = vand.u32 %v128, 4294901760
    %v402 = vsub.f32 %v128, %v401
    %403 = vmatmul.mubr.f32.gmra.mxu0 %v402
    %v404 = vpop.f32.mrf.mxu0
    %v405 = vadd.f32 %v319, %v404
    %v406 = vpop.f32.mrf.mxu0
    %407 = vdwg.mxu0
    %408 = vmatprep.subr.mxu0 0.0
    %409 = vmatpush1.msra.mxu0 0.0
    %410 = vmatprep.subr.mxu0 0.0
    %411 = vmatpush1.msra.mxu0 0.0
    %412 = vmatprep.subr.mxu0 0.0
    %413 = vmatpush1.msra.mxu0 0.0
    %414 = vmatprep.subr.mxu0 0.0
    %415 = vmatpush1.msra.mxu0 0.0
    %416 = vmatprep.subr.mxu0 0.0
    %417 = vmatpush1.msra.mxu0 0.0
    %418 = vmatprep.subr.mxu0 0.0
    %419 = vmatpush1.msra.mxu0 0.0
    %420 = vmatprep.subr.mxu0 0.0
    %421 = vmatpush1.msra.mxu0 0.0
    %422 = vmatprep.subr.mxu0 0.0
    %423 = vmatpush1.msra.mxu0 0.0
    %424 = vmatprep.subr.mxu0 0.0
    %425 = vmatpush1.msra.mxu0 0.0
    %426 = vmatprep.subr.mxu0 0.0
    %v427 = vand.u32 %v132, 4294901760
    %428 = vmatpush1.msra.mxu0 %v427
    %429 = vmatprep.subr.mxu0 0.0
    %v430 = vand.u32 %v124, 4294901760
    %431 = vmatpush1.msra.mxu0 %v430
    %432 = vmatprep.subr.mxu0 0.0
    %v433 = vand.u32 %v123, 4294901760
    %434 = vmatpush1.msra.mxu0 %v433
    %435 = vmatprep.subr.mxu0 0.0
    %v436 = vand.u32 %v122, 4294901760
    %437 = vmatpush1.msra.mxu0 %v436
    %438 = vmatprep.subr.mxu0 0.0
    %v439 = vand.u32 %v121, 4294901760
    %440 = vmatpush1.msra.mxu0 %v439
    %441 = vmatprep.subr.mxu0 0.0
    %v442 = vand.u32 %v120, 4294901760
    %443 = vmatpush1.msra.mxu0 %v442
    %444 = vmatprep.subr.mxu0 0.0
    %v445 = vand.u32 %v119, 4294901760
    %446 = vmatpush1.msra.mxu0 %v445
    %447 = vmatprep.subr.mxu0 0.0
    %448 = vmatpush2.msra.mxu0 0.0
    %449 = vmatprep.subr.mxu0 0.0
    %450 = vmatpush2.msra.mxu0 0.0
    %451 = vmatprep.subr.mxu0 0.0
    %452 = vmatpush2.msra.mxu0 0.0
    %453 = vmatprep.subr.mxu0 0.0
    %454 = vmatpush2.msra.mxu0 0.0
    %455 = vmatprep.subr.mxu0 0.0
    %456 = vmatpush2.msra.mxu0 0.0
    %457 = vmatprep.subr.mxu0 0.0
    %458 = vmatpush2.msra.mxu0 0.0
    %459 = vmatprep.subr.mxu0 0.0
    %460 = vmatpush2.msra.mxu0 0.0
    %461 = vmatprep.subr.mxu0 0.0
    %462 = vmatpush2.msra.mxu0 0.0
    %463 = vmatprep.subr.mxu0 0.0
    %464 = vmatpush2.msra.mxu0 0.0
    %465 = vmatprep.subr.mxu0 0.0
    %466 = vmatpush2.msra.mxu0 0.0
    %467 = vmatprep.subr.mxu0 0.0
    %468 = vmatpush2.msra.mxu0 0.0
    %469 = vmatprep.subr.mxu0 0.0
    %470 = vmatpush2.msra.mxu0 0.0
    %471 = vmatprep.subr.mxu0 0.0
    %472 = vmatpush2.msra.mxu0 0.0
    %473 = vmatprep.subr.mxu0 0.0
    %474 = vmatpush2.msra.mxu0 0.0
    %475 = vmatprep.subr.mxu0 0.0
    %476 = vmatpush2.msra.mxu0 0.0
    %477 = vmatprep.subr.mxu0 0.0
    %478 = vmatpush2.msra.mxu0 0.0
    %479 = vmatprep.mubr.f32.mxu0 0.0
    %v480 = vand.u32 %v128, 4294901760
    %v481 = vsub.f32 %v128, %v480
    %v482 = vand.u32 %v481, 4294901760
    %483 = vmatmul.mubr.f32.gmra.mxu0 %v482
    %v484 = vpop.f32.mrf.mxu0
    %v485 = vadd.f32 %v405, %v484
    %v486 = vpop.f32.mrf.mxu0
    %487 = vdwg.mxu0
    %488 = vmatprep.subr.mxu0 0.0
    %489 = vmatpush1.msra.mxu0 0.0
    %490 = vmatprep.subr.mxu0 0.0
    %491 = vmatpush1.msra.mxu0 0.0
    %492 = vmatprep.subr.mxu0 0.0
    %493 = vmatpush1.msra.mxu0 0.0
    %494 = vmatprep.subr.mxu0 0.0
    %495 = vmatpush1.msra.mxu0 0.0
    %496 = vmatprep.subr.mxu0 0.0
    %497 = vmatpush1.msra.mxu0 0.0
    %498 = vmatprep.subr.mxu0 0.0
    %499 = vmatpush1.msra.mxu0 0.0
    %500 = vmatprep.subr.mxu0 0.0
    %501 = vmatpush1.msra.mxu0 0.0
    %502 = vmatprep.subr.mxu0 0.0
    %503 = vmatpush1.msra.mxu0 0.0
    %504 = vmatprep.subr.mxu0 0.0
    %505 = vmatpush1.msra.mxu0 0.0
    %506 = vmatprep.subr.mxu0 0.0
    %v507 = vand.u32 %v132, 4294901760
    %v508 = vsub.f32 %v132, %v507
    %v509 = vand.u32 %v508, 4294901760
    %510 = vmatpush1.msra.mxu0 %v509
    %511 = vmatprep.subr.mxu0 0.0
    %v512 = vand.u32 %v124, 4294901760
    %v513 = vsub.f32 %v124, %v512
    %v514 = vand.u32 %v513, 4294901760
    %515 = vmatpush1.msra.mxu0 %v514
    %516 = vmatprep.subr.mxu0 0.0
    %v517 = vand.u32 %v123, 4294901760
    %v518 = vsub.f32 %v123, %v517
    %v519 = vand.u32 %v518, 4294901760
    %520 = vmatpush1.msra.mxu0 %v519
    %521 = vmatprep.subr.mxu0 0.0
    %v522 = vand.u32 %v122, 4294901760
    %v523 = vsub.f32 %v122, %v522
    %v524 = vand.u32 %v523, 4294901760
    %525 = vmatpush1.msra.mxu0 %v524
    %526 = vmatprep.subr.mxu0 0.0
    %v527 = vand.u32 %v121, 4294901760
    %v528 = vsub.f32 %v121, %v527
    %v529 = vand.u32 %v528, 4294901760
    %530 = vmatpush1.msra.mxu0 %v529
    %531 = vmatprep.subr.mxu0 0.0
    %v532 = vand.u32 %v120, 4294901760
    %v533 = vsub.f32 %v120, %v532
    %v534 = vand.u32 %v533, 4294901760
    %535 = vmatpush1.msra.mxu0 %v534
    %536 = vmatprep.subr.mxu0 0.0
    %v537 = vand.u32 %v119, 4294901760
    %v538 = vsub.f32 %v119, %v537
    %v539 = vand.u32 %v538, 4294901760
    %540 = vmatpush1.msra.mxu0 %v539
    %541 = vmatprep.subr.mxu0 0.0
    %542 = vmatpush2.msra.mxu0 0.0
    %543 = vmatprep.subr.mxu0 0.0
    %544 = vmatpush2.msra.mxu0 0.0
    %545 = vmatprep.subr.mxu0 0.0
    %546 = vmatpush2.msra.mxu0 0.0
    %547 = vmatprep.subr.mxu0 0.0
    %548 = vmatpush2.msra.mxu0 0.0
    %549 = vmatprep.subr.mxu0 0.0
    %550 = vmatpush2.msra.mxu0 0.0
    %551 = vmatprep.subr.mxu0 0.0
    %552 = vmatpush2.msra.mxu0 0.0
    %553 = vmatprep.subr.mxu0 0.0
    %554 = vmatpush2.msra.mxu0 0.0
    %555 = vmatprep.subr.mxu0 0.0
    %556 = vmatpush2.msra.mxu0 0.0
    %557 = vmatprep.subr.mxu0 0.0
    %558 = vmatpush2.msra.mxu0 0.0
    %559 = vmatprep.subr.mxu0 0.0
    %560 = vmatpush2.msra.mxu0 0.0
    %561 = vmatprep.subr.mxu0 0.0
    %562 = vmatpush2.msra.mxu0 0.0
    %563 = vmatprep.subr.mxu0 0.0
    %564 = vmatpush2.msra.mxu0 0.0
    %565 = vmatprep.subr.mxu0 0.0
    %566 = vmatpush2.msra.mxu0 0.0
    %567 = vmatprep.subr.mxu0 0.0
    %568 = vmatpush2.msra.mxu0 0.0
    %569 = vmatprep.subr.mxu0 0.0
    %570 = vmatpush2.msra.mxu0 0.0
    %571 = vmatprep.subr.mxu0 0.0
    %572 = vmatpush2.msra.mxu0 0.0
    %573 = vmatprep.mubr.f32.mxu0 0.0
    %v574 = vand.u32 %v128, 4294901760
    %575 = vmatmul.mubr.f32.gmra.mxu0 %v574
    %v576 = vpop.f32.mrf.mxu0
    %v577 = vadd.f32 %v485, %v576
    %v578 = vpop.f32.mrf.mxu0
    %579 = vdwg.mxu0
    %580 = vmatprep.subr.mxu0 0.0
    %581 = vmatpush1.msra.mxu0 0.0
    %582 = vmatprep.subr.mxu0 0.0
    %583 = vmatpush1.msra.mxu0 0.0
    %584 = vmatprep.subr.mxu0 0.0
    %585 = vmatpush1.msra.mxu0 0.0
    %586 = vmatprep.subr.mxu0 0.0
    %587 = vmatpush1.msra.mxu0 0.0
    %588 = vmatprep.subr.mxu0 0.0
    %589 = vmatpush1.msra.mxu0 0.0
    %590 = vmatprep.subr.mxu0 0.0
    %591 = vmatpush1.msra.mxu0 0.0
    %592 = vmatprep.subr.mxu0 0.0
    %593 = vmatpush1.msra.mxu0 0.0
    %594 = vmatprep.subr.mxu0 0.0
    %595 = vmatpush1.msra.mxu0 0.0
    %596 = vmatprep.subr.mxu0 0.0
    %597 = vmatpush1.msra.mxu0 0.0
    %598 = vmatprep.subr.mxu0 0.0
    %v599 = vand.u32 %v132, 4294901760
    %600 = vmatpush1.msra.mxu0 %v599
    %601 = vmatprep.subr.mxu0 0.0
    %v602 = vand.u32 %v124, 4294901760
    %603 = vmatpush1.msra.mxu0 %v602
    %604 = vmatprep.subr.mxu0 0.0
    %v605 = vand.u32 %v123, 4294901760
    %606 = vmatpush1.msra.mxu0 %v605
    %607 = vmatprep.subr.mxu0 0.0
    %v608 = vand.u32 %v122, 4294901760
    %609 = vmatpush1.msra.mxu0 %v608
    %610 = vmatprep.subr.mxu0 0.0
    %v611 = vand.u32 %v121, 4294901760
    %612 = vmatpush1.msra.mxu0 %v611
    %613 = vmatprep.subr.mxu0 0.0
    %v614 = vand.u32 %v120, 4294901760
    %615 = vmatpush1.msra.mxu0 %v614
    %616 = vmatprep.subr.mxu0 0.0
    %v617 = vand.u32 %v119, 4294901760
    %618 = vmatpush1.msra.mxu0 %v617
    %619 = vmatprep.subr.mxu0 0.0
    %620 = vmatpush2.msra.mxu0 0.0
    %621 = vmatprep.subr.mxu0 0.0
    %622 = vmatpush2.msra.mxu0 0.0
    %623 = vmatprep.subr.mxu0 0.0
    %624 = vmatpush2.msra.mxu0 0.0
    %625 = vmatprep.subr.mxu0 0.0
    %626 = vmatpush2.msra.mxu0 0.0
    %627 = vmatprep.subr.mxu0 0.0
    %628 = vmatpush2.msra.mxu0 0.0
    %629 = vmatprep.subr.mxu0 0.0
    %630 = vmatpush2.msra.mxu0 0.0
    %631 = vmatprep.subr.mxu0 0.0
    %632 = vmatpush2.msra.mxu0 0.0
    %633 = vmatprep.subr.mxu0 0.0
    %634 = vmatpush2.msra.mxu0 0.0
    %635 = vmatprep.subr.mxu0 0.0
    %636 = vmatpush2.msra.mxu0 0.0
    %637 = vmatprep.subr.mxu0 0.0
    %638 = vmatpush2.msra.mxu0 0.0
    %639 = vmatprep.subr.mxu0 0.0
    %640 = vmatpush2.msra.mxu0 0.0
    %641 = vmatprep.subr.mxu0 0.0
    %642 = vmatpush2.msra.mxu0 0.0
    %643 = vmatprep.subr.mxu0 0.0
    %644 = vmatpush2.msra.mxu0 0.0
    %645 = vmatprep.subr.mxu0 0.0
    %646 = vmatpush2.msra.mxu0 0.0
    %647 = vmatprep.subr.mxu0 0.0
    %648 = vmatpush2.msra.mxu0 0.0
    %649 = vmatprep.subr.mxu0 0.0
    %650 = vmatpush2.msra.mxu0 0.0
    %651 = vmatprep.mubr.f32.mxu0 0.0
    %v652 = vand.u32 %v128, 4294901760
    %653 = vmatmul.mubr.f32.gmra.mxu0 %v652
    %v654 = vpop.f32.mrf.mxu0
    %v655 = vadd.f32 %v577, %v654
    %v656 = vpop.f32.mrf.mxu0
    %657 = vdwg.mxu0
    %vm658 = vcmask 261120
    %659 = vst.msk [vmem:[#allocation2] sm:$0xff] %vm658, %v655
    %v660 = vld [vmem:[%s7] sm:$0xff]
    %v661 = vld [vmem:[%s6] sm:$0xff]
    %663 = vrot.lane.b32.xlu0 %v661, 32
    %v664 = vpop.permute.xlu0 %663
    %vm666 = vcmask 523520
    %667 = vst.msk [vmem:[#allocation2] sm:$0xff] %vm666, %v664
    %v668 = vld [vmem:[#allocation2] sm:$0xff]
    %v669 = vld [vmem:[%s2] sm:$0xff]
    %v670 = vld [vmem:[%s2 + $0x8] sm:$0xff]
    %v671 = vld [vmem:[%s2 + $0x10] sm:$0xff]
    %v672 = vld [vmem:[%s2 + $0x18] sm:$0xff]
    %v673 = vld [vmem:[%s2 + $0x20] sm:$0xff]
    %v674 = vld [vmem:[%s2 + $0x28] sm:$0xff]
    %v675 = vld [vmem:[%s2 + $0x30] sm:$0xff]
    %v676 = vld [vmem:[%s2 + $0x38] sm:$0xff]
    %v677 = vld [vmem:[%s3] sm:$0x1]
    %v679 = vlaneseq
    %v680 = vshrl.u32 %v679, 7
    %v681 = vsub.s32 0, %v680
    %v682 = vrot.slane %v677, %v681
    %vm684 = vcmask 523264
    %v686 = vsel %vm684, %v668, 0
    %688 = vmatprep.subr.mxu0 0.0
    %689 = vmatpush1.msra.mxu0 0.0
    %690 = vmatprep.subr.mxu0 0.0
    %691 = vmatpush1.msra.mxu0 0.0
    %692 = vmatprep.subr.mxu0 0.0
    %693 = vmatpush1.msra.mxu0 0.0
    %694 = vmatprep.subr.mxu0 0.0
    %695 = vmatpush1.msra.mxu0 0.0
    %696 = vmatprep.subr.mxu0 0.0
    %697 = vmatpush1.msra.mxu0 0.0
    %698 = vmatprep.subr.mxu0 0.0
    %699 = vmatpush1.msra.mxu0 0.0
    %700 = vmatprep.subr.mxu0 0.0
    %701 = vmatpush1.msra.mxu0 0.0
    %702 = vmatprep.subr.mxu0 0.0
    %703 = vmatpush1.msra.mxu0 0.0
    %704 = vmatprep.subr.mxu0 0.0
    %v705 = vand.u32 %v676, 4294901760
    %706 = vmatpush1.msra.mxu0 %v705
    %707 = vmatprep.subr.mxu0 0.0
    %v708 = vand.u32 %v675, 4294901760
    %709 = vmatpush1.msra.mxu0 %v708
    %710 = vmatprep.subr.mxu0 0.0
    %v711 = vand.u32 %v674, 4294901760
    %712 = vmatpush1.msra.mxu0 %v711
    %713 = vmatprep.subr.mxu0 0.0
    %v714 = vand.u32 %v673, 4294901760
    %715 = vmatpush1.msra.mxu0 %v714
    %716 = vmatprep.subr.mxu0 0.0
    %v717 = vand.u32 %v672, 4294901760
    %718 = vmatpush1.msra.mxu0 %v717
    %719 = vmatprep.subr.mxu0 0.0
    %v720 = vand.u32 %v671, 4294901760
    %721 = vmatpush1.msra.mxu0 %v720
    %722 = vmatprep.subr.mxu0 0.0
    %v723 = vand.u32 %v670, 4294901760
    %724 = vmatpush1.msra.mxu0 %v723
    %725 = vmatprep.subr.mxu0 0.0
    %v726 = vand.u32 %v669, 4294901760
    %727 = vmatpush1.msra.mxu0 %v726
    %728 = vmatprep.subr.mxu0 0.0
    %729 = vmatpush2.msra.mxu0 0.0
    %730 = vmatprep.subr.mxu0 0.0
    %731 = vmatpush2.msra.mxu0 0.0
    %732 = vmatprep.subr.mxu0 0.0
    %733 = vmatpush2.msra.mxu0 0.0
    %734 = vmatprep.subr.mxu0 0.0
    %735 = vmatpush2.msra.mxu0 0.0
    %736 = vmatprep.subr.mxu0 0.0
    %737 = vmatpush2.msra.mxu0 0.0
    %738 = vmatprep.subr.mxu0 0.0
    %739 = vmatpush2.msra.mxu0 0.0
    %740 = vmatprep.subr.mxu0 0.0
    %741 = vmatpush2.msra.mxu0 0.0
    %742 = vmatprep.subr.mxu0 0.0
    %743 = vmatpush2.msra.mxu0 0.0
    %744 = vmatprep.subr.mxu0 0.0
    %745 = vmatpush2.msra.mxu0 0.0
    %746 = vmatprep.subr.mxu0 0.0
    %747 = vmatpush2.msra.mxu0 0.0
    %748 = vmatprep.subr.mxu0 0.0
    %749 = vmatpush2.msra.mxu0 0.0
    %750 = vmatprep.subr.mxu0 0.0
    %751 = vmatpush2.msra.mxu0 0.0
    %752 = vmatprep.subr.mxu0 0.0
    %753 = vmatpush2.msra.mxu0 0.0
    %754 = vmatprep.subr.mxu0 0.0
    %755 = vmatpush2.msra.mxu0 0.0
    %756 = vmatprep.subr.mxu0 0.0
    %757 = vmatpush2.msra.mxu0 0.0
    %758 = vmatprep.subr.mxu0 0.0
    %759 = vmatpush2.msra.mxu0 0.0
    %760 = vmatprep.mubr.f32.mxu0 0.0
    %v761 = vand.u32 %v686, 4294901760
    %v762 = vsub.f32 %v686, %v761
    %v763 = vand.u32 %v762, 4294901760
    %v764 = vsub.f32 %v762, %v763
    %v765 = vand.u32 %v764, 4294901760
    %766 = vmatmul.mubr.f32.gmra.mxu0 %v765
    %v767 = vpop.f32.mrf.mxu0
    %v768 = vadd.f32 %v682, %v767
    %v769 = vpop.f32.mrf.mxu0
    %770 = vdwg.mxu0
    %771 = vmatprep.subr.mxu0 0.0
    %772 = vmatpush1.msra.mxu0 0.0
    %773 = vmatprep.subr.mxu0 0.0
    %774 = vmatpush1.msra.mxu0 0.0
    %775 = vmatprep.subr.mxu0 0.0
    %776 = vmatpush1.msra.mxu0 0.0
    %777 = vmatprep.subr.mxu0 0.0
    %778 = vmatpush1.msra.mxu0 0.0
    %779 = vmatprep.subr.mxu0 0.0
    %780 = vmatpush1.msra.mxu0 0.0
    %781 = vmatprep.subr.mxu0 0.0
    %782 = vmatpush1.msra.mxu0 0.0
    %783 = vmatprep.subr.mxu0 0.0
    %784 = vmatpush1.msra.mxu0 0.0
    %785 = vmatprep.subr.mxu0 0.0
    %786 = vmatpush1.msra.mxu0 0.0
    %787 = vmatprep.subr.mxu0 0.0
    %v788 = vand.u32 %v676, 4294901760
    %v789 = vsub.f32 %v676, %v788
    %v790 = vand.u32 %v789, 4294901760
    %v791 = vsub.f32 %v789, %v790
    %v792 = vand.u32 %v791, 4294901760
    %793 = vmatpush1.msra.mxu0 %v792
    %794 = vmatprep.subr.mxu0 0.0
    %v795 = vand.u32 %v675, 4294901760
    %v796 = vsub.f32 %v675, %v795
    %v797 = vand.u32 %v796, 4294901760
    %v798 = vsub.f32 %v796, %v797
    %v799 = vand.u32 %v798, 4294901760
    %800 = vmatpush1.msra.mxu0 %v799
    %801 = vmatprep.subr.mxu0 0.0
    %v802 = vand.u32 %v674, 4294901760
    %v803 = vsub.f32 %v674, %v802
    %v804 = vand.u32 %v803, 4294901760
    %v805 = vsub.f32 %v803, %v804
    %v806 = vand.u32 %v805, 4294901760
    %807 = vmatpush1.msra.mxu0 %v806
    %808 = vmatprep.subr.mxu0 0.0
    %v809 = vand.u32 %v673, 4294901760
    %v810 = vsub.f32 %v673, %v809
    %v811 = vand.u32 %v810, 4294901760
    %v812 = vsub.f32 %v810, %v811
    %v813 = vand.u32 %v812, 4294901760
    %814 = vmatpush1.msra.mxu0 %v813
    %815 = vmatprep.subr.mxu0 0.0
    %v816 = vand.u32 %v672, 4294901760
    %v817 = vsub.f32 %v672, %v816
    %v818 = vand.u32 %v817, 4294901760
    %v819 = vsub.f32 %v817, %v818
    %v820 = vand.u32 %v819, 4294901760
    %821 = vmatpush1.msra.mxu0 %v820
    %822 = vmatprep.subr.mxu0 0.0
    %v823 = vand.u32 %v671, 4294901760
    %v824 = vsub.f32 %v671, %v823
    %v825 = vand.u32 %v824, 4294901760
    %v826 = vsub.f32 %v824, %v825
    %v827 = vand.u32 %v826, 4294901760
    %828 = vmatpush1.msra.mxu0 %v827
    %829 = vmatprep.subr.mxu0 0.0
    %v830 = vand.u32 %v670, 4294901760
    %v831 = vsub.f32 %v670, %v830
    %v832 = vand.u32 %v831, 4294901760
    %v833 = vsub.f32 %v831, %v832
    %v834 = vand.u32 %v833, 4294901760
    %835 = vmatpush1.msra.mxu0 %v834
    %836 = vmatprep.subr.mxu0 0.0
    %v837 = vand.u32 %v669, 4294901760
    %v838 = vsub.f32 %v669, %v837
    %v839 = vand.u32 %v838, 4294901760
    %v840 = vsub.f32 %v838, %v839
    %v841 = vand.u32 %v840, 4294901760
    %842 = vmatpush1.msra.mxu0 %v841
    %843 = vmatprep.subr.mxu0 0.0
    %844 = vmatpush2.msra.mxu0 0.0
    %845 = vmatprep.subr.mxu0 0.0
    %846 = vmatpush2.msra.mxu0 0.0
    %847 = vmatprep.subr.mxu0 0.0
    %848 = vmatpush2.msra.mxu0 0.0
    %849 = vmatprep.subr.mxu0 0.0
    %850 = vmatpush2.msra.mxu0 0.0
    %851 = vmatprep.subr.mxu0 0.0
    %852 = vmatpush2.msra.mxu0 0.0
    %853 = vmatprep.subr.mxu0 0.0
    %854 = vmatpush2.msra.mxu0 0.0
    %855 = vmatprep.subr.mxu0 0.0
    %856 = vmatpush2.msra.mxu0 0.0
    %857 = vmatprep.subr.mxu0 0.0
    %858 = vmatpush2.msra.mxu0 0.0
    %859 = vmatprep.subr.mxu0 0.0
    %860 = vmatpush2.msra.mxu0 0.0
    %861 = vmatprep.subr.mxu0 0.0
    %862 = vmatpush2.msra.mxu0 0.0
    %863 = vmatprep.subr.mxu0 0.0
    %864 = vmatpush2.msra.mxu0 0.0
    %865 = vmatprep.subr.mxu0 0.0
    %866 = vmatpush2.msra.mxu0 0.0
    %867 = vmatprep.subr.mxu0 0.0
    %868 = vmatpush2.msra.mxu0 0.0
    %869 = vmatprep.subr.mxu0 0.0
    %870 = vmatpush2.msra.mxu0 0.0
    %871 = vmatprep.subr.mxu0 0.0
    %872 = vmatpush2.msra.mxu0 0.0
    %873 = vmatprep.subr.mxu0 0.0
    %874 = vmatpush2.msra.mxu0 0.0
    %875 = vmatprep.mubr.f32.mxu0 0.0
    %v876 = vand.u32 %v686, 4294901760
    %877 = vmatmul.mubr.f32.gmra.mxu0 %v876
    %v878 = vpop.f32.mrf.mxu0
    %v879 = vadd.f32 %v768, %v878
    %v880 = vpop.f32.mrf.mxu0
    %881 = vdwg.mxu0
    %882 = vmatprep.subr.mxu0 0.0
    %883 = vmatpush1.msra.mxu0 0.0
    %884 = vmatprep.subr.mxu0 0.0
    %885 = vmatpush1.msra.mxu0 0.0
    %886 = vmatprep.subr.mxu0 0.0
    %887 = vmatpush1.msra.mxu0 0.0
    %888 = vmatprep.subr.mxu0 0.0
    %889 = vmatpush1.msra.mxu0 0.0
    %890 = vmatprep.subr.mxu0 0.0
    %891 = vmatpush1.msra.mxu0 0.0
    %892 = vmatprep.subr.mxu0 0.0
    %893 = vmatpush1.msra.mxu0 0.0
    %894 = vmatprep.subr.mxu0 0.0
    %895 = vmatpush1.msra.mxu0 0.0
    %896 = vmatprep.subr.mxu0 0.0
    %897 = vmatpush1.msra.mxu0 0.0
    %898 = vmatprep.subr.mxu0 0.0
    %v899 = vand.u32 %v676, 4294901760
    %v900 = vsub.f32 %v676, %v899
    %901 = vmatpush1.msra.mxu0 %v900
    %902 = vmatprep.subr.mxu0 0.0
    %v903 = vand.u32 %v675, 4294901760
    %v904 = vsub.f32 %v675, %v903
    %905 = vmatpush1.msra.mxu0 %v904
    %906 = vmatprep.subr.mxu0 0.0
    %v907 = vand.u32 %v674, 4294901760
    %v908 = vsub.f32 %v674, %v907
    %909 = vmatpush1.msra.mxu0 %v908
    %910 = vmatprep.subr.mxu0 0.0
    %v911 = vand.u32 %v673, 4294901760
    %v912 = vsub.f32 %v673, %v911
    %913 = vmatpush1.msra.mxu0 %v912
    %914 = vmatprep.subr.mxu0 0.0
    %v915 = vand.u32 %v672, 4294901760
    %v916 = vsub.f32 %v672, %v915
    %917 = vmatpush1.msra.mxu0 %v916
    %918 = vmatprep.subr.mxu0 0.0
    %v919 = vand.u32 %v671, 4294901760
    %v920 = vsub.f32 %v671, %v919
    %921 = vmatpush1.msra.mxu0 %v920
    %922 = vmatprep.subr.mxu0 0.0
    %v923 = vand.u32 %v670, 4294901760
    %v924 = vsub.f32 %v670, %v923
    %925 = vmatpush1.msra.mxu0 %v924
    %926 = vmatprep.subr.mxu0 0.0
    %v927 = vand.u32 %v669, 4294901760
    %v928 = vsub.f32 %v669, %v927
    %929 = vmatpush1.msra.mxu0 %v928
    %930 = vmatprep.subr.mxu0 0.0
    %931 = vmatpush2.msra.mxu0 0.0
    %932 = vmatprep.subr.mxu0 0.0
    %933 = vmatpush2.msra.mxu0 0.0
    %934 = vmatprep.subr.mxu0 0.0
    %935 = vmatpush2.msra.mxu0 0.0
    %936 = vmatprep.subr.mxu0 0.0
    %937 = vmatpush2.msra.mxu0 0.0
    %938 = vmatprep.subr.mxu0 0.0
    %939 = vmatpush2.msra.mxu0 0.0
    %940 = vmatprep.subr.mxu0 0.0
    %941 = vmatpush2.msra.mxu0 0.0
    %942 = vmatprep.subr.mxu0 0.0
    %943 = vmatpush2.msra.mxu0 0.0
    %944 = vmatprep.subr.mxu0 0.0
    %945 = vmatpush2.msra.mxu0 0.0
    %946 = vmatprep.subr.mxu0 0.0
    %947 = vmatpush2.msra.mxu0 0.0
    %948 = vmatprep.subr.mxu0 0.0
    %949 = vmatpush2.msra.mxu0 0.0
    %950 = vmatprep.subr.mxu0 0.0
    %951 = vmatpush2.msra.mxu0 0.0
    %952 = vmatprep.subr.mxu0 0.0
    %953 = vmatpush2.msra.mxu0 0.0
    %954 = vmatprep.subr.mxu0 0.0
    %955 = vmatpush2.msra.mxu0 0.0
    %956 = vmatprep.subr.mxu0 0.0
    %957 = vmatpush2.msra.mxu0 0.0
    %958 = vmatprep.subr.mxu0 0.0
    %959 = vmatpush2.msra.mxu0 0.0
    %960 = vmatprep.subr.mxu0 0.0
    %961 = vmatpush2.msra.mxu0 0.0
    %962 = vmatprep.mubr.f32.mxu0 0.0
    %v963 = vand.u32 %v686, 4294901760
    %v964 = vsub.f32 %v686, %v963
    %965 = vmatmul.mubr.f32.gmra.mxu0 %v964
    %v966 = vpop.f32.mrf.mxu0
    %v967 = vadd.f32 %v879, %v966
    %v968 = vpop.f32.mrf.mxu0
    %969 = vdwg.mxu0
    %970 = vmatprep.subr.mxu0 0.0
    %971 = vmatpush1.msra.mxu0 0.0
    %972 = vmatprep.subr.mxu0 0.0
    %973 = vmatpush1.msra.mxu0 0.0
    %974 = vmatprep.subr.mxu0 0.0
    %975 = vmatpush1.msra.mxu0 0.0
    %976 = vmatprep.subr.mxu0 0.0
    %977 = vmatpush1.msra.mxu0 0.0
    %978 = vmatprep.subr.mxu0 0.0
    %979 = vmatpush1.msra.mxu0 0.0
    %980 = vmatprep.subr.mxu0 0.0
    %981 = vmatpush1.msra.mxu0 0.0
    %982 = vmatprep.subr.mxu0 0.0
    %983 = vmatpush1.msra.mxu0 0.0
    %984 = vmatprep.subr.mxu0 0.0
    %985 = vmatpush1.msra.mxu0 0.0
    %986 = vmatprep.subr.mxu0 0.0
    %v987 = vand.u32 %v676, 4294901760
    %988 = vmatpush1.msra.mxu0 %v987
    %989 = vmatprep.subr.mxu0 0.0
    %v990 = vand.u32 %v675, 4294901760
    %991 = vmatpush1.msra.mxu0 %v990
    %992 = vmatprep.subr.mxu0 0.0
    %v993 = vand.u32 %v674, 4294901760
    %994 = vmatpush1.msra.mxu0 %v993
    %995 = vmatprep.subr.mxu0 0.0
    %v996 = vand.u32 %v673, 4294901760
    %997 = vmatpush1.msra.mxu0 %v996
    %998 = vmatprep.subr.mxu0 0.0
    %v999 = vand.u32 %v672, 4294901760
    %1000 = vmatpush1.msra.mxu0 %v999
    %1001 = vmatprep.subr.mxu0 0.0
    %v1002 = vand.u32 %v671, 4294901760
    %1003 = vmatpush1.msra.mxu0 %v1002
    %1004 = vmatprep.subr.mxu0 0.0
    %v1005 = vand.u32 %v670, 4294901760
    %1006 = vmatpush1.msra.mxu0 %v1005
    %1007 = vmatprep.subr.mxu0 0.0
    %v1008 = vand.u32 %v669, 4294901760
    %1009 = vmatpush1.msra.mxu0 %v1008
    %1010 = vmatprep.subr.mxu0 0.0
    %1011 = vmatpush2.msra.mxu0 0.0
    %1012 = vmatprep.subr.mxu0 0.0
    %1013 = vmatpush2.msra.mxu0 0.0
    %1014 = vmatprep.subr.mxu0 0.0
    %1015 = vmatpush2.msra.mxu0 0.0
    %1016 = vmatprep.subr.mxu0 0.0
    %1017 = vmatpush2.msra.mxu0 0.0
    %1018 = vmatprep.subr.mxu0 0.0
    %1019 = vmatpush2.msra.mxu0 0.0
    %1020 = vmatprep.subr.mxu0 0.0
    %1021 = vmatpush2.msra.mxu0 0.0
    %1022 = vmatprep.subr.mxu0 0.0
    %1023 = vmatpush2.msra.mxu0 0.0
    %1024 = vmatprep.subr.mxu0 0.0
    %1025 = vmatpush2.msra.mxu0 0.0
    %1026 = vmatprep.subr.mxu0 0.0
    %1027 = vmatpush2.msra.mxu0 0.0
    %1028 = vmatprep.subr.mxu0 0.0
    %1029 = vmatpush2.msra.mxu0 0.0
    %1030 = vmatprep.subr.mxu0 0.0
    %1031 = vmatpush2.msra.mxu0 0.0
    %1032 = vmatprep.subr.mxu0 0.0
    %1033 = vmatpush2.msra.mxu0 0.0
    %1034 = vmatprep.subr.mxu0 0.0
    %1035 = vmatpush2.msra.mxu0 0.0
    %1036 = vmatprep.subr.mxu0 0.0
    %1037 = vmatpush2.msra.mxu0 0.0
    %1038 = vmatprep.subr.mxu0 0.0
    %1039 = vmatpush2.msra.mxu0 0.0
    %1040 = vmatprep.subr.mxu0 0.0
    %1041 = vmatpush2.msra.mxu0 0.0
    %1042 = vmatprep.mubr.f32.mxu0 0.0
    %v1043 = vand.u32 %v686, 4294901760
    %v1044 = vsub.f32 %v686, %v1043
    %v1045 = vand.u32 %v1044, 4294901760
    %1046 = vmatmul.mubr.f32.gmra.mxu0 %v1045
    %v1047 = vpop.f32.mrf.mxu0
    %v1048 = vadd.f32 %v967, %v1047
    %v1049 = vpop.f32.mrf.mxu0
    %1050 = vdwg.mxu0
    %1051 = vmatprep.subr.mxu0 0.0
    %1052 = vmatpush1.msra.mxu0 0.0
    %1053 = vmatprep.subr.mxu0 0.0
    %1054 = vmatpush1.msra.mxu0 0.0
    %1055 = vmatprep.subr.mxu0 0.0
    %1056 = vmatpush1.msra.mxu0 0.0
    %1057 = vmatprep.subr.mxu0 0.0
    %1058 = vmatpush1.msra.mxu0 0.0
    %1059 = vmatprep.subr.mxu0 0.0
    %1060 = vmatpush1.msra.mxu0 0.0
    %1061 = vmatprep.subr.mxu0 0.0
    %1062 = vmatpush1.msra.mxu0 0.0
    %1063 = vmatprep.subr.mxu0 0.0
    %1064 = vmatpush1.msra.mxu0 0.0
    %1065 = vmatprep.subr.mxu0 0.0
    %1066 = vmatpush1.msra.mxu0 0.0
    %1067 = vmatprep.subr.mxu0 0.0
    %v1068 = vand.u32 %v676, 4294901760
    %v1069 = vsub.f32 %v676, %v1068
    %v1070 = vand.u32 %v1069, 4294901760
    %1071 = vmatpush1.msra.mxu0 %v1070
    %1072 = vmatprep.subr.mxu0 0.0
    %v1073 = vand.u32 %v675, 4294901760
    %v1074 = vsub.f32 %v675, %v1073
    %v1075 = vand.u32 %v1074, 4294901760
    %1076 = vmatpush1.msra.mxu0 %v1075
    %1077 = vmatprep.subr.mxu0 0.0
    %v1078 = vand.u32 %v674, 4294901760
    %v1079 = vsub.f32 %v674, %v1078
    %v1080 = vand.u32 %v1079, 4294901760
    %1081 = vmatpush1.msra.mxu0 %v1080
    %1082 = vmatprep.subr.mxu0 0.0
    %v1083 = vand.u32 %v673, 4294901760
    %v1084 = vsub.f32 %v673, %v1083
    %v1085 = vand.u32 %v1084, 4294901760
    %1086 = vmatpush1.msra.mxu0 %v1085
    %1087 = vmatprep.subr.mxu0 0.0
    %v1088 = vand.u32 %v672, 4294901760
    %v1089 = vsub.f32 %v672, %v1088
    %v1090 = vand.u32 %v1089, 4294901760
    %1091 = vmatpush1.msra.mxu0 %v1090
    %1092 = vmatprep.subr.mxu0 0.0
    %v1093 = vand.u32 %v671, 4294901760
    %v1094 = vsub.f32 %v671, %v1093
    %v1095 = vand.u32 %v1094, 4294901760
    %1096 = vmatpush1.msra.mxu0 %v1095
    %1097 = vmatprep.subr.mxu0 0.0
    %v1098 = vand.u32 %v670, 4294901760
    %v1099 = vsub.f32 %v670, %v1098
    %v1100 = vand.u32 %v1099, 4294901760
    %1101 = vmatpush1.msra.mxu0 %v1100
    %1102 = vmatprep.subr.mxu0 0.0
    %v1103 = vand.u32 %v669, 4294901760
    %v1104 = vsub.f32 %v669, %v1103
    %v1105 = vand.u32 %v1104, 4294901760
    %1106 = vmatpush1.msra.mxu0 %v1105
    %1107 = vmatprep.subr.mxu0 0.0
    %1108 = vmatpush2.msra.mxu0 0.0
    %1109 = vmatprep.subr.mxu0 0.0
    %1110 = vmatpush2.msra.mxu0 0.0
    %1111 = vmatprep.subr.mxu0 0.0
    %1112 = vmatpush2.msra.mxu0 0.0
    %1113 = vmatprep.subr.mxu0 0.0
    %1114 = vmatpush2.msra.mxu0 0.0
    %1115 = vmatprep.subr.mxu0 0.0
    %1116 = vmatpush2.msra.mxu0 0.0
    %1117 = vmatprep.subr.mxu0 0.0
    %1118 = vmatpush2.msra.mxu0 0.0
    %1119 = vmatprep.subr.mxu0 0.0
    %1120 = vmatpush2.msra.mxu0 0.0
    %1121 = vmatprep.subr.mxu0 0.0
    %1122 = vmatpush2.msra.mxu0 0.0
    %1123 = vmatprep.subr.mxu0 0.0
    %1124 = vmatpush2.msra.mxu0 0.0
    %1125 = vmatprep.subr.mxu0 0.0
    %1126 = vmatpush2.msra.mxu0 0.0
    %1127 = vmatprep.subr.mxu0 0.0
    %1128 = vmatpush2.msra.mxu0 0.0
    %1129 = vmatprep.subr.mxu0 0.0
    %1130 = vmatpush2.msra.mxu0 0.0
    %1131 = vmatprep.subr.mxu0 0.0
    %1132 = vmatpush2.msra.mxu0 0.0
    %1133 = vmatprep.subr.mxu0 0.0
    %1134 = vmatpush2.msra.mxu0 0.0
    %1135 = vmatprep.subr.mxu0 0.0
    %1136 = vmatpush2.msra.mxu0 0.0
    %1137 = vmatprep.subr.mxu0 0.0
    %1138 = vmatpush2.msra.mxu0 0.0
    %1139 = vmatprep.mubr.f32.mxu0 0.0
    %v1140 = vand.u32 %v686, 4294901760
    %1141 = vmatmul.mubr.f32.gmra.mxu0 %v1140
    %v1142 = vpop.f32.mrf.mxu0
    %v1143 = vadd.f32 %v1048, %v1142
    %v1144 = vpop.f32.mrf.mxu0
    %1145 = vdwg.mxu0
    %1146 = vmatprep.subr.mxu0 0.0
    %1147 = vmatpush1.msra.mxu0 0.0
    %1148 = vmatprep.subr.mxu0 0.0
    %1149 = vmatpush1.msra.mxu0 0.0
    %1150 = vmatprep.subr.mxu0 0.0
    %1151 = vmatpush1.msra.mxu0 0.0
    %1152 = vmatprep.subr.mxu0 0.0
    %1153 = vmatpush1.msra.mxu0 0.0
    %1154 = vmatprep.subr.mxu0 0.0
    %1155 = vmatpush1.msra.mxu0 0.0
    %1156 = vmatprep.subr.mxu0 0.0
    %1157 = vmatpush1.msra.mxu0 0.0
    %1158 = vmatprep.subr.mxu0 0.0
    %1159 = vmatpush1.msra.mxu0 0.0
    %1160 = vmatprep.subr.mxu0 0.0
    %1161 = vmatpush1.msra.mxu0 0.0
    %1162 = vmatprep.subr.mxu0 0.0
    %v1163 = vand.u32 %v676, 4294901760
    %1164 = vmatpush1.msra.mxu0 %v1163
    %1165 = vmatprep.subr.mxu0 0.0
    %v1166 = vand.u32 %v675, 4294901760
    %1167 = vmatpush1.msra.mxu0 %v1166
    %1168 = vmatprep.subr.mxu0 0.0
    %v1169 = vand.u32 %v674, 4294901760
    %1170 = vmatpush1.msra.mxu0 %v1169
    %1171 = vmatprep.subr.mxu0 0.0
    %v1172 = vand.u32 %v673, 4294901760
    %1173 = vmatpush1.msra.mxu0 %v1172
    %1174 = vmatprep.subr.mxu0 0.0
    %v1175 = vand.u32 %v672, 4294901760
    %1176 = vmatpush1.msra.mxu0 %v1175
    %1177 = vmatprep.subr.mxu0 0.0
    %v1178 = vand.u32 %v671, 4294901760
    %1179 = vmatpush1.msra.mxu0 %v1178
    %1180 = vmatprep.subr.mxu0 0.0
    %v1181 = vand.u32 %v670, 4294901760
    %1182 = vmatpush1.msra.mxu0 %v1181
    %1183 = vmatprep.subr.mxu0 0.0
    %v1184 = vand.u32 %v669, 4294901760
    %1185 = vmatpush1.msra.mxu0 %v1184
    %1186 = vmatprep.subr.mxu0 0.0
    %1187 = vmatpush2.msra.mxu0 0.0
    %1188 = vmatprep.subr.mxu0 0.0
    %1189 = vmatpush2.msra.mxu0 0.0
    %1190 = vmatprep.subr.mxu0 0.0
    %1191 = vmatpush2.msra.mxu0 0.0
    %1192 = vmatprep.subr.mxu0 0.0
    %1193 = vmatpush2.msra.mxu0 0.0
    %1194 = vmatprep.subr.mxu0 0.0
    %1195 = vmatpush2.msra.mxu0 0.0
    %1196 = vmatprep.subr.mxu0 0.0
    %1197 = vmatpush2.msra.mxu0 0.0
    %1198 = vmatprep.subr.mxu0 0.0
    %1199 = vmatpush2.msra.mxu0 0.0
    %1200 = vmatprep.subr.mxu0 0.0
    %1201 = vmatpush2.msra.mxu0 0.0
    %1202 = vmatprep.subr.mxu0 0.0
    %1203 = vmatpush2.msra.mxu0 0.0
    %1204 = vmatprep.subr.mxu0 0.0
    %1205 = vmatpush2.msra.mxu0 0.0
    %1206 = vmatprep.subr.mxu0 0.0
    %1207 = vmatpush2.msra.mxu0 0.0
    %1208 = vmatprep.subr.mxu0 0.0
    %1209 = vmatpush2.msra.mxu0 0.0
    %1210 = vmatprep.subr.mxu0 0.0
    %1211 = vmatpush2.msra.mxu0 0.0
    %1212 = vmatprep.subr.mxu0 0.0
    %1213 = vmatpush2.msra.mxu0 0.0
    %1214 = vmatprep.subr.mxu0 0.0
    %1215 = vmatpush2.msra.mxu0 0.0
    %1216 = vmatprep.subr.mxu0 0.0
    %1217 = vmatpush2.msra.mxu0 0.0
    %1218 = vmatprep.mubr.f32.mxu0 0.0
    %v1219 = vand.u32 %v686, 4294901760
    %1220 = vmatmul.mubr.f32.gmra.mxu0 %v1219
    %v1221 = vpop.f32.mrf.mxu0
    %v1222 = vadd.f32 %v1143, %v1221
    %v1223 = vpop.f32.mrf.mxu0
    %1224 = vdwg.mxu0
    %v1225 = vxor.u32 %v1222, 2147483648
    %v1226 = vmul.f32 %v1225, 1.442695
    %v1227 = vpow.pop %v1226
    %v1228 = vadd.f32 %v1227, 1.0
    %v1229 = vrcp.pop %v1228
    %v1230 = vmul.f32 1.0, %v1229
    %v1231 = vtanh.pop %v1222
    %1233 = vrot.lane.b32.xlu0 %v660, 32
    %v1234 = vpop.permute.xlu0 %1233
    %v1236 = vmul.f32 %v1230, %v1234
    %1238 = vrot.lane.b32.xlu0 %v1231, 64
    %v1239 = vpop.permute.xlu0 %1238
    %v1241 = vmul.f32 %v1230, %v1239
    %1243 = vrot.lane.b32.xlu0 %v1241, 32
    %v1244 = vpop.permute.xlu0 %1243
    %v1246 = vadd.f32 %v1236, %v1244
    %v1247 = vtanh.pop %v1246
    %1249 = vrot.lane.b32.xlu0 %v1247, 64
    %v1250 = vpop.permute.xlu0 %1249
    %v1252 = vmul.f32 %v1230, %v1250
    %1254 = vrot.lane.b32.xlu0 %v1252, 32
    %v1255 = vpop.permute.xlu0 %1254
    %1257 = vst.msk [vmem:[%s9] sm:$0xff] %vm658, %v1255
    %1259 = vrot.lane.b32.xlu0 %v1246, 96
    %v1260 = vpop.permute.xlu0 %1259
    %1262 = vst.msk [vmem:[%s10] sm:$0xff] %vm658, %v1260
    %1263 = vst.msk [vmem:[#allocation2] sm:$0xff] %vm658, %v1255
    %s1264 = scalar_lea.vmem %s7, 8
    %v1265 = vld [vmem:[%s1264] sm:$0xff]
    %s1266 = scalar_lea.vmem %s6, 8
    %v1267 = vld [vmem:[%s1266] sm:$0xff]
    %1269 = vrot.lane.b32.xlu0 %v1267, 32
    %v1270 = vpop.permute.xlu0 %1269
    %1272 = vst.msk [vmem:[#allocation2] sm:$0xff] %vm666, %v1270
    %v1273 = vld [vmem:[#allocation2] sm:$0xff]
    %s1274 = scalar_lea.vmem %s2, 64
    %v1275 = vld [vmem:[%s1274] sm:$0xff]
    %v1276 = vld [vmem:[%s1274 + $0x8] sm:$0xff]
    %v1277 = vld [vmem:[%s1274 + $0x10] sm:$0xff]
    %v1278 = vld [vmem:[%s1274 + $0x18] sm:$0xff]
    %v1279 = vld [vmem:[%s1274 + $0x20] sm:$0xff]
    %v1280 = vld [vmem:[%s1274 + $0x28] sm:$0xff]
    %v1281 = vld [vmem:[%s1274 + $0x30] sm:$0xff]
    %v1282 = vld [vmem:[%s1274 + $0x38] sm:$0xff]
    %s1283 = scalar_lea.vmem %s3, 1
    %v1284 = vld [vmem:[%s1283] sm:$0x1]
    %v1286 = vlaneseq
    %v1287 = vshrl.u32 %v1286, 7
    %v1288 = vsub.s32 0, %v1287
    %v1289 = vrot.slane %v1284, %v1288
    %v1292 = vsel %vm684, %v1273, 0
    %1294 = vmatprep.subr.mxu0 0.0
    %1295 = vmatpush1.msra.mxu0 0.0
    %1296 = vmatprep.subr.mxu0 0.0
    %1297 = vmatpush1.msra.mxu0 0.0
    %1298 = vmatprep.subr.mxu0 0.0
    %1299 = vmatpush1.msra.mxu0 0.0
    %1300 = vmatprep.subr.mxu0 0.0
    %1301 = vmatpush1.msra.mxu0 0.0
    %1302 = vmatprep.subr.mxu0 0.0
    %1303 = vmatpush1.msra.mxu0 0.0
    %1304 = vmatprep.subr.mxu0 0.0
    %1305 = vmatpush1.msra.mxu0 0.0
    %1306 = vmatprep.subr.mxu0 0.0
    %1307 = vmatpush1.msra.mxu0 0.0
    %1308 = vmatprep.subr.mxu0 0.0
    %1309 = vmatpush1.msra.mxu0 0.0
    %1310 = vmatprep.subr.mxu0 0.0
    %v1311 = vand.u32 %v1282, 4294901760
    %1312 = vmatpush1.msra.mxu0 %v1311
    %1313 = vmatprep.subr.mxu0 0.0
    %v1314 = vand.u32 %v1281, 4294901760
    %1315 = vmatpush1.msra.mxu0 %v1314
    %1316 = vmatprep.subr.mxu0 0.0
    %v1317 = vand.u32 %v1280, 4294901760
    %1318 = vmatpush1.msra.mxu0 %v1317
    %1319 = vmatprep.subr.mxu0 0.0
    %v1320 = vand.u32 %v1279, 4294901760
    %1321 = vmatpush1.msra.mxu0 %v1320
    %1322 = vmatprep.subr.mxu0 0.0
    %v1323 = vand.u32 %v1278, 4294901760
    %1324 = vmatpush1.msra.mxu0 %v1323
    %1325 = vmatprep.subr.mxu0 0.0
    %v1326 = vand.u32 %v1277, 4294901760
    %1327 = vmatpush1.msra.mxu0 %v1326
    %1328 = vmatprep.subr.mxu0 0.0
    %v1329 = vand.u32 %v1276, 4294901760
    %1330 = vmatpush1.msra.mxu0 %v1329
    %1331 = vmatprep.subr.mxu0 0.0
    %v1332 = vand.u32 %v1275, 4294901760
    %1333 = vmatpush1.msra.mxu0 %v1332
    %1334 = vmatprep.subr.mxu0 0.0
    %1335 = vmatpush2.msra.mxu0 0.0
    %1336 = vmatprep.subr.mxu0 0.0
    %1337 = vmatpush2.msra.mxu0 0.0
    %1338 = vmatprep.subr.mxu0 0.0
    %1339 = vmatpush2.msra.mxu0 0.0
    %1340 = vmatprep.subr.mxu0 0.0
    %1341 = vmatpush2.msra.mxu0 0.0
    %1342 = vmatprep.subr.mxu0 0.0
    %1343 = vmatpush2.msra.mxu0 0.0
    %1344 = vmatprep.subr.mxu0 0.0
    %1345 = vmatpush2.msra.mxu0 0.0
    %1346 = vmatprep.subr.mxu0 0.0
    %1347 = vmatpush2.msra.mxu0 0.0
    %1348 = vmatprep.subr.mxu0 0.0
    %1349 = vmatpush2.msra.mxu0 0.0
    %1350 = vmatprep.subr.mxu0 0.0
    %1351 = vmatpush2.msra.mxu0 0.0
    %1352 = vmatprep.subr.mxu0 0.0
    %1353 = vmatpush2.msra.mxu0 0.0
    %1354 = vmatprep.subr.mxu0 0.0
    %1355 = vmatpush2.msra.mxu0 0.0
    %1356 = vmatprep.subr.mxu0 0.0
    %1357 = vmatpush2.msra.mxu0 0.0
    %1358 = vmatprep.subr.mxu0 0.0
    %1359 = vmatpush2.msra.mxu0 0.0
    %1360 = vmatprep.subr.mxu0 0.0
    %1361 = vmatpush2.msra.mxu0 0.0
    %1362 = vmatprep.subr.mxu0 0.0
    %1363 = vmatpush2.msra.mxu0 0.0
    %1364 = vmatprep.subr.mxu0 0.0
    %1365 = vmatpush2.msra.mxu0 0.0
    %1366 = vmatprep.mubr.f32.mxu0 0.0
    %v1367 = vand.u32 %v1292, 4294901760
    %v1368 = vsub.f32 %v1292, %v1367
    %v1369 = vand.u32 %v1368, 4294901760
    %v1370 = vsub.f32 %v1368, %v1369
    %v1371 = vand.u32 %v1370, 4294901760
    %1372 = vmatmul.mubr.f32.gmra.mxu0 %v1371
    %v1373 = vpop.f32.mrf.mxu0
    %v1374 = vadd.f32 %v1289, %v1373
    %v1375 = vpop.f32.mrf.mxu0
    %1376 = vdwg.mxu0
    %1377 = vmatprep.subr.mxu0 0.0
    %1378 = vmatpush1.msra.mxu0 0.0
    %1379 = vmatprep.subr.mxu0 0.0
    %1380 = vmatpush1.msra.mxu0 0.0
    %1381 = vmatprep.subr.mxu0 0.0
    %1382 = vmatpush1.msra.mxu0 0.0
    %1383 = vmatprep.subr.mxu0 0.0
    %1384 = vmatpush1.msra.mxu0 0.0
    %1385 = vmatprep.subr.mxu0 0.0
    %1386 = vmatpush1.msra.mxu0 0.0
    %1387 = vmatprep.subr.mxu0 0.0
    %1388 = vmatpush1.msra.mxu0 0.0
    %1389 = vmatprep.subr.mxu0 0.0
    %1390 = vmatpush1.msra.mxu0 0.0
    %1391 = vmatprep.subr.mxu0 0.0
    %1392 = vmatpush1.msra.mxu0 0.0
    %1393 = vmatprep.subr.mxu0 0.0
    %v1394 = vand.u32 %v1282, 4294901760
    %v1395 = vsub.f32 %v1282, %v1394
    %v1396 = vand.u32 %v1395, 4294901760
    %v1397 = vsub.f32 %v1395, %v1396
    %v1398 = vand.u32 %v1397, 4294901760
    %1399 = vmatpush1.msra.mxu0 %v1398
    %1400 = vmatprep.subr.mxu0 0.0
    %v1401 = vand.u32 %v1281, 4294901760
    %v1402 = vsub.f32 %v1281, %v1401
    %v1403 = vand.u32 %v1402, 4294901760
    %v1404 = vsub.f32 %v1402, %v1403
    %v1405 = vand.u32 %v1404, 4294901760
    %1406 = vmatpush1.msra.mxu0 %v1405
    %1407 = vmatprep.subr.mxu0 0.0
    %v1408 = vand.u32 %v1280, 4294901760
    %v1409 = vsub.f32 %v1280, %v1408
    %v1410 = vand.u32 %v1409, 4294901760
    %v1411 = vsub.f32 %v1409, %v1410
    %v1412 = vand.u32 %v1411, 4294901760
    %1413 = vmatpush1.msra.mxu0 %v1412
    %1414 = vmatprep.subr.mxu0 0.0
    %v1415 = vand.u32 %v1279, 4294901760
    %v1416 = vsub.f32 %v1279, %v1415
    %v1417 = vand.u32 %v1416, 4294901760
    %v1418 = vsub.f32 %v1416, %v1417
    %v1419 = vand.u32 %v1418, 4294901760
    %1420 = vmatpush1.msra.mxu0 %v1419
    %1421 = vmatprep.subr.mxu0 0.0
    %v1422 = vand.u32 %v1278, 4294901760
    %v1423 = vsub.f32 %v1278, %v1422
    %v1424 = vand.u32 %v1423, 4294901760
    %v1425 = vsub.f32 %v1423, %v1424
    %v1426 = vand.u32 %v1425, 4294901760
    %1427 = vmatpush1.msra.mxu0 %v1426
    %1428 = vmatprep.subr.mxu0 0.0
    %v1429 = vand.u32 %v1277, 4294901760
    %v1430 = vsub.f32 %v1277, %v1429
    %v1431 = vand.u32 %v1430, 4294901760
    %v1432 = vsub.f32 %v1430, %v1431
    %v1433 = vand.u32 %v1432, 4294901760
    %1434 = vmatpush1.msra.mxu0 %v1433
    %1435 = vmatprep.subr.mxu0 0.0
    %v1436 = vand.u32 %v1276, 4294901760
    %v1437 = vsub.f32 %v1276, %v1436
    %v1438 = vand.u32 %v1437, 4294901760
    %v1439 = vsub.f32 %v1437, %v1438
    %v1440 = vand.u32 %v1439, 4294901760
    %1441 = vmatpush1.msra.mxu0 %v1440
    %1442 = vmatprep.subr.mxu0 0.0
    %v1443 = vand.u32 %v1275, 4294901760
    %v1444 = vsub.f32 %v1275, %v1443
    %v1445 = vand.u32 %v1444, 4294901760
    %v1446 = vsub.f32 %v1444, %v1445
    %v1447 = vand.u32 %v1446, 4294901760
    %1448 = vmatpush1.msra.mxu0 %v1447
    %1449 = vmatprep.subr.mxu0 0.0
    %1450 = vmatpush2.msra.mxu0 0.0
    %1451 = vmatprep.subr.mxu0 0.0
    %1452 = vmatpush2.msra.mxu0 0.0
    %1453 = vmatprep.subr.mxu0 0.0
    %1454 = vmatpush2.msra.mxu0 0.0
    %1455 = vmatprep.subr.mxu0 0.0
    %1456 = vmatpush2.msra.mxu0 0.0
    %1457 = vmatprep.subr.mxu0 0.0
    %1458 = vmatpush2.msra.mxu0 0.0
    %1459 = vmatprep.subr.mxu0 0.0
    %1460 = vmatpush2.msra.mxu0 0.0
    %1461 = vmatprep.subr.mxu0 0.0
    %1462 = vmatpush2.msra.mxu0 0.0
    %1463 = vmatprep.subr.mxu0 0.0
    %1464 = vmatpush2.msra.mxu0 0.0
    %1465 = vmatprep.subr.mxu0 0.0
    %1466 = vmatpush2.msra.mxu0 0.0
    %1467 = vmatprep.subr.mxu0 0.0
    %1468 = vmatpush2.msra.mxu0 0.0
    %1469 = vmatprep.subr.mxu0 0.0
    %1470 = vmatpush2.msra.mxu0 0.0
    %1471 = vmatprep.subr.mxu0 0.0
    %1472 = vmatpush2.msra.mxu0 0.0
    %1473 = vmatprep.subr.mxu0 0.0
    %1474 = vmatpush2.msra.mxu0 0.0
    %1475 = vmatprep.subr.mxu0 0.0
    %1476 = vmatpush2.msra.mxu0 0.0
    %1477 = vmatprep.subr.mxu0 0.0
    %1478 = vmatpush2.msra.mxu0 0.0
    %1479 = vmatprep.subr.mxu0 0.0
    %1480 = vmatpush2.msra.mxu0 0.0
    %1481 = vmatprep.mubr.f32.mxu0 0.0
    %v1482 = vand.u32 %v1292, 4294901760
    %1483 = vmatmul.mubr.f32.gmra.mxu0 %v1482
    %v1484 = vpop.f32.mrf.mxu0
    %v1485 = vadd.f32 %v1374, %v1484
    %v1486 = vpop.f32.mrf.mxu0
    %1487 = vdwg.mxu0
    %1488 = vmatprep.subr.mxu0 0.0
    %1489 = vmatpush1.msra.mxu0 0.0
    %1490 = vmatprep.subr.mxu0 0.0
    %1491 = vmatpush1.msra.mxu0 0.0
    %1492 = vmatprep.subr.mxu0 0.0
    %1493 = vmatpush1.msra.mxu0 0.0
    %1494 = vmatprep.subr.mxu0 0.0
    %1495 = vmatpush1.msra.mxu0 0.0
    %1496 = vmatprep.subr.mxu0 0.0
    %1497 = vmatpush1.msra.mxu0 0.0
    %1498 = vmatprep.subr.mxu0 0.0
    %1499 = vmatpush1.msra.mxu0 0.0
    %1500 = vmatprep.subr.mxu0 0.0
    %1501 = vmatpush1.msra.mxu0 0.0
    %1502 = vmatprep.subr.mxu0 0.0
    %1503 = vmatpush1.msra.mxu0 0.0
    %1504 = vmatprep.subr.mxu0 0.0
    %v1505 = vand.u32 %v1282, 4294901760
    %v1506 = vsub.f32 %v1282, %v1505
    %1507 = vmatpush1.msra.mxu0 %v1506
    %1508 = vmatprep.subr.mxu0 0.0
    %v1509 = vand.u32 %v1281, 4294901760
    %v1510 = vsub.f32 %v1281, %v1509
    %1511 = vmatpush1.msra.mxu0 %v1510
    %1512 = vmatprep.subr.mxu0 0.0
    %v1513 = vand.u32 %v1280, 4294901760
    %v1514 = vsub.f32 %v1280, %v1513
    %1515 = vmatpush1.msra.mxu0 %v1514
    %1516 = vmatprep.subr.mxu0 0.0
    %v1517 = vand.u32 %v1279, 4294901760
    %v1518 = vsub.f32 %v1279, %v1517
    %1519 = vmatpush1.msra.mxu0 %v1518
    %1520 = vmatprep.subr.mxu0 0.0
    %v1521 = vand.u32 %v1278, 4294901760
    %v1522 = vsub.f32 %v1278, %v1521
    %1523 = vmatpush1.msra.mxu0 %v1522
    %1524 = vmatprep.subr.mxu0 0.0
    %v1525 = vand.u32 %v1277, 4294901760
    %v1526 = vsub.f32 %v1277, %v1525
    %1527 = vmatpush1.msra.mxu0 %v1526
    %1528 = vmatprep.subr.mxu0 0.0
    %v1529 = vand.u32 %v1276, 4294901760
    %v1530 = vsub.f32 %v1276, %v1529
    %1531 = vmatpush1.msra.mxu0 %v1530
    %1532 = vmatprep.subr.mxu0 0.0
    %v1533 = vand.u32 %v1275, 4294901760
    %v1534 = vsub.f32 %v1275, %v1533
    %1535 = vmatpush1.msra.mxu0 %v1534
    %1536 = vmatprep.subr.mxu0 0.0
    %1537 = vmatpush2.msra.mxu0 0.0
    %1538 = vmatprep.subr.mxu0 0.0
    %1539 = vmatpush2.msra.mxu0 0.0
    %1540 = vmatprep.subr.mxu0 0.0
    %1541 = vmatpush2.msra.mxu0 0.0
    %1542 = vmatprep.subr.mxu0 0.0
    %1543 = vmatpush2.msra.mxu0 0.0
    %1544 = vmatprep.subr.mxu0 0.0
    %1545 = vmatpush2.msra.mxu0 0.0
    %1546 = vmatprep.subr.mxu0 0.0
    %1547 = vmatpush2.msra.mxu0 0.0
    %1548 = vmatprep.subr.mxu0 0.0
    %1549 = vmatpush2.msra.mxu0 0.0
    %1550 = vmatprep.subr.mxu0 0.0
    %1551 = vmatpush2.msra.mxu0 0.0
    %1552 = vmatprep.subr.mxu0 0.0
    %1553 = vmatpush2.msra.mxu0 0.0
    %1554 = vmatprep.subr.mxu0 0.0
    %1555 = vmatpush2.msra.mxu0 0.0
    %1556 = vmatprep.subr.mxu0 0.0
    %1557 = vmatpush2.msra.mxu0 0.0
    %1558 = vmatprep.subr.mxu0 0.0
    %1559 = vmatpush2.msra.mxu0 0.0
    %1560 = vmatprep.subr.mxu0 0.0
    %1561 = vmatpush2.msra.mxu0 0.0
    %1562 = vmatprep.subr.mxu0 0.0
    %1563 = vmatpush2.msra.mxu0 0.0
    %1564 = vmatprep.subr.mxu0 0.0
    %1565 = vmatpush2.msra.mxu0 0.0
    %1566 = vmatprep.subr.mxu0 0.0
    %1567 = vmatpush2.msra.mxu0 0.0
    %1568 = vmatprep.mubr.f32.mxu0 0.0
    %v1569 = vand.u32 %v1292, 4294901760
    %v1570 = vsub.f32 %v1292, %v1569
    %1571 = vmatmul.mubr.f32.gmra.mxu0 %v1570
    %v1572 = vpop.f32.mrf.mxu0
    %v1573 = vadd.f32 %v1485, %v1572
    %v1574 = vpop.f32.mrf.mxu0
    %1575 = vdwg.mxu0
    %1576 = vmatprep.subr.mxu0 0.0
    %1577 = vmatpush1.msra.mxu0 0.0
    %1578 = vmatprep.subr.mxu0 0.0
    %1579 = vmatpush1.msra.mxu0 0.0
    %1580 = vmatprep.subr.mxu0 0.0
    %1581 = vmatpush1.msra.mxu0 0.0
    %1582 = vmatprep.subr.mxu0 0.0
    %1583 = vmatpush1.msra.mxu0 0.0
    %1584 = vmatprep.subr.mxu0 0.0
    %1585 = vmatpush1.msra.mxu0 0.0
    %1586 = vmatprep.subr.mxu0 0.0
    %1587 = vmatpush1.msra.mxu0 0.0
    %1588 = vmatprep.subr.mxu0 0.0
    %1589 = vmatpush1.msra.mxu0 0.0
    %1590 = vmatprep.subr.mxu0 0.0
    %1591 = vmatpush1.msra.mxu0 0.0
    %1592 = vmatprep.subr.mxu0 0.0
    %v1593 = vand.u32 %v1282, 4294901760
    %1594 = vmatpush1.msra.mxu0 %v1593
    %1595 = vmatprep.subr.mxu0 0.0
    %v1596 = vand.u32 %v1281, 4294901760
    %1597 = vmatpush1.msra.mxu0 %v1596
    %1598 = vmatprep.subr.mxu0 0.0
    %v1599 = vand.u32 %v1280, 4294901760
    %1600 = vmatpush1.msra.mxu0 %v1599
    %1601 = vmatprep.subr.mxu0 0.0
    %v1602 = vand.u32 %v1279, 4294901760
    %1603 = vmatpush1.msra.mxu0 %v1602
    %1604 = vmatprep.subr.mxu0 0.0
    %v1605 = vand.u32 %v1278, 4294901760
    %1606 = vmatpush1.msra.mxu0 %v1605
    %1607 = vmatprep.subr.mxu0 0.0
    %v1608 = vand.u32 %v1277, 4294901760
    %1609 = vmatpush1.msra.mxu0 %v1608
    %1610 = vmatprep.subr.mxu0 0.0
    %v1611 = vand.u32 %v1276, 4294901760
    %1612 = vmatpush1.msra.mxu0 %v1611
    %1613 = vmatprep.subr.mxu0 0.0
    %v1614 = vand.u32 %v1275, 4294901760
    %1615 = vmatpush1.msra.mxu0 %v1614
    %1616 = vmatprep.subr.mxu0 0.0
    %1617 = vmatpush2.msra.mxu0 0.0
    %1618 = vmatprep.subr.mxu0 0.0
    %1619 = vmatpush2.msra.mxu0 0.0
    %1620 = vmatprep.subr.mxu0 0.0
    %1621 = vmatpush2.msra.mxu0 0.0
    %1622 = vmatprep.subr.mxu0 0.0
    %1623 = vmatpush2.msra.mxu0 0.0
    %1624 = vmatprep.subr.mxu0 0.0
    %1625 = vmatpush2.msra.mxu0 0.0
    %1626 = vmatprep.subr.mxu0 0.0
    %1627 = vmatpush2.msra.mxu0 0.0
    %1628 = vmatprep.subr.mxu0 0.0
    %1629 = vmatpush2.msra.mxu0 0.0
    %1630 = vmatprep.subr.mxu0 0.0
    %1631 = vmatpush2.msra.mxu0 0.0
    %1632 = vmatprep.subr.mxu0 0.0
    %1633 = vmatpush2.msra.mxu0 0.0
    %1634 = vmatprep.subr.mxu0 0.0
    %1635 = vmatpush2.msra.mxu0 0.0
    %1636 = vmatprep.subr.mxu0 0.0
    %1637 = vmatpush2.msra.mxu0 0.0
    %1638 = vmatprep.subr.mxu0 0.0
    %1639 = vmatpush2.msra.mxu0 0.0
    %1640 = vmatprep.subr.mxu0 0.0
    %1641 = vmatpush2.msra.mxu0 0.0
    %1642 = vmatprep.subr.mxu0 0.0
    %1643 = vmatpush2.msra.mxu0 0.0
    %1644 = vmatprep.subr.mxu0 0.0
    %1645 = vmatpush2.msra.mxu0 0.0
    %1646 = vmatprep.subr.mxu0 0.0
    %1647 = vmatpush2.msra.mxu0 0.0
    %1648 = vmatprep.mubr.f32.mxu0 0.0
    %v1649 = vand.u32 %v1292, 4294901760
    %v1650 = vsub.f32 %v1292, %v1649
    %v1651 = vand.u32 %v1650, 4294901760
    %1652 = vmatmul.mubr.f32.gmra.mxu0 %v1651
    %v1653 = vpop.f32.mrf.mxu0
    %v1654 = vadd.f32 %v1573, %v1653
    %v1655 = vpop.f32.mrf.mxu0
    %1656 = vdwg.mxu0
    %1657 = vmatprep.subr.mxu0 0.0
    %1658 = vmatpush1.msra.mxu0 0.0
    %1659 = vmatprep.subr.mxu0 0.0
    %1660 = vmatpush1.msra.mxu0 0.0
    %1661 = vmatprep.subr.mxu0 0.0
    %1662 = vmatpush1.msra.mxu0 0.0
    %1663 = vmatprep.subr.mxu0 0.0
    %1664 = vmatpush1.msra.mxu0 0.0
    %1665 = vmatprep.subr.mxu0 0.0
    %1666 = vmatpush1.msra.mxu0 0.0
    %1667 = vmatprep.subr.mxu0 0.0
    %1668 = vmatpush1.msra.mxu0 0.0
    %1669 = vmatprep.subr.mxu0 0.0
    %1670 = vmatpush1.msra.mxu0 0.0
    %1671 = vmatprep.subr.mxu0 0.0
    %1672 = vmatpush1.msra.mxu0 0.0
    %1673 = vmatprep.subr.mxu0 0.0
    %v1674 = vand.u32 %v1282, 4294901760
    %v1675 = vsub.f32 %v1282, %v1674
    %v1676 = vand.u32 %v1675, 4294901760
    %1677 = vmatpush1.msra.mxu0 %v1676
    %1678 = vmatprep.subr.mxu0 0.0
    %v1679 = vand.u32 %v1281, 4294901760
    %v1680 = vsub.f32 %v1281, %v1679
    %v1681 = vand.u32 %v1680, 4294901760
    %1682 = vmatpush1.msra.mxu0 %v1681
    %1683 = vmatprep.subr.mxu0 0.0
    %v1684 = vand.u32 %v1280, 4294901760
    %v1685 = vsub.f32 %v1280, %v1684
    %v1686 = vand.u32 %v1685, 4294901760
    %1687 = vmatpush1.msra.mxu0 %v1686
    %1688 = vmatprep.subr.mxu0 0.0
    %v1689 = vand.u32 %v1279, 4294901760
    %v1690 = vsub.f32 %v1279, %v1689
    %v1691 = vand.u32 %v1690, 4294901760
    %1692 = vmatpush1.msra.mxu0 %v1691
    %1693 = vmatprep.subr.mxu0 0.0
    %v1694 = vand.u32 %v1278, 4294901760
    %v1695 = vsub.f32 %v1278, %v1694
    %v1696 = vand.u32 %v1695, 4294901760
    %1697 = vmatpush1.msra.mxu0 %v1696
    %1698 = vmatprep.subr.mxu0 0.0
    %v1699 = vand.u32 %v1277, 4294901760
    %v1700 = vsub.f32 %v1277, %v1699
    %v1701 = vand.u32 %v1700, 4294901760
    %1702 = vmatpush1.msra.mxu0 %v1701
    %1703 = vmatprep.subr.mxu0 0.0
    %v1704 = vand.u32 %v1276, 4294901760
    %v1705 = vsub.f32 %v1276, %v1704
    %v1706 = vand.u32 %v1705, 4294901760
    %1707 = vmatpush1.msra.mxu0 %v1706
    %1708 = vmatprep.subr.mxu0 0.0
    %v1709 = vand.u32 %v1275, 4294901760
    %v1710 = vsub.f32 %v1275, %v1709
    %v1711 = vand.u32 %v1710, 4294901760
    %1712 = vmatpush1.msra.mxu0 %v1711
    %1713 = vmatprep.subr.mxu0 0.0
    %1714 = vmatpush2.msra.mxu0 0.0
    %1715 = vmatprep.subr.mxu0 0.0
    %1716 = vmatpush2.msra.mxu0 0.0
    %1717 = vmatprep.subr.mxu0 0.0
    %1718 = vmatpush2.msra.mxu0 0.0
    %1719 = vmatprep.subr.mxu0 0.0
    %1720 = vmatpush2.msra.mxu0 0.0
    %1721 = vmatprep.subr.mxu0 0.0
    %1722 = vmatpush2.msra.mxu0 0.0
    %1723 = vmatprep.subr.mxu0 0.0
    %1724 = vmatpush2.msra.mxu0 0.0
    %1725 = vmatprep.subr.mxu0 0.0
    %1726 = vmatpush2.msra.mxu0 0.0
    %1727 = vmatprep.subr.mxu0 0.0
    %1728 = vmatpush2.msra.mxu0 0.0
    %1729 = vmatprep.subr.mxu0 0.0
    %1730 = vmatpush2.msra.mxu0 0.0
    %1731 = vmatprep.subr.mxu0 0.0
    %1732 = vmatpush2.msra.mxu0 0.0
    %1733 = vmatprep.subr.mxu0 0.0
    %1734 = vmatpush2.msra.mxu0 0.0
    %1735 = vmatprep.subr.mxu0 0.0
    %1736 = vmatpush2.msra.mxu0 0.0
    %1737 = vmatprep.subr.mxu0 0.0
    %1738 = vmatpush2.msra.mxu0 0.0
    %1739 = vmatprep.subr.mxu0 0.0
    %1740 = vmatpush2.msra.mxu0 0.0
    %1741 = vmatprep.subr.mxu0 0.0
    %1742 = vmatpush2.msra.mxu0 0.0
    %1743 = vmatprep.subr.mxu0 0.0
    %1744 = vmatpush2.msra.mxu0 0.0
    %1745 = vmatprep.mubr.f32.mxu0 0.0
    %v1746 = vand.u32 %v1292, 4294901760
    %1747 = vmatmul.mubr.f32.gmra.mxu0 %v1746
    %v1748 = vpop.f32.mrf.mxu0
    %v1749 = vadd.f32 %v1654, %v1748
    %v1750 = vpop.f32.mrf.mxu0
    %1751 = vdwg.mxu0
    %1752 = vmatprep.subr.mxu0 0.0
    %1753 = vmatpush1.msra.mxu0 0.0
    %1754 = vmatprep.subr.mxu0 0.0
    %1755 = vmatpush1.msra.mxu0 0.0
    %1756 = vmatprep.subr.mxu0 0.0
    %1757 = vmatpush1.msra.mxu0 0.0
    %1758 = vmatprep.subr.mxu0 0.0
    %1759 = vmatpush1.msra.mxu0 0.0
    %1760 = vmatprep.subr.mxu0 0.0
    %1761 = vmatpush1.msra.mxu0 0.0
    %1762 = vmatprep.subr.mxu0 0.0
    %1763 = vmatpush1.msra.mxu0 0.0
    %1764 = vmatprep.subr.mxu0 0.0
    %1765 = vmatpush1.msra.mxu0 0.0
    %1766 = vmatprep.subr.mxu0 0.0
    %1767 = vmatpush1.msra.mxu0 0.0
    %1768 = vmatprep.subr.mxu0 0.0
    %v1769 = vand.u32 %v1282, 4294901760
    %1770 = vmatpush1.msra.mxu0 %v1769
    %1771 = vmatprep.subr.mxu0 0.0
    %v1772 = vand.u32 %v1281, 4294901760
    %1773 = vmatpush1.msra.mxu0 %v1772
    %1774 = vmatprep.subr.mxu0 0.0
    %v1775 = vand.u32 %v1280, 4294901760
    %1776 = vmatpush1.msra.mxu0 %v1775
    %1777 = vmatprep.subr.mxu0 0.0
    %v1778 = vand.u32 %v1279, 4294901760
    %1779 = vmatpush1.msra.mxu0 %v1778
    %1780 = vmatprep.subr.mxu0 0.0
    %v1781 = vand.u32 %v1278, 4294901760
    %1782 = vmatpush1.msra.mxu0 %v1781
    %1783 = vmatprep.subr.mxu0 0.0
    %v1784 = vand.u32 %v1277, 4294901760
    %1785 = vmatpush1.msra.mxu0 %v1784
    %1786 = vmatprep.subr.mxu0 0.0
    %v1787 = vand.u32 %v1276, 4294901760
    %1788 = vmatpush1.msra.mxu0 %v1787
    %1789 = vmatprep.subr.mxu0 0.0
    %v1790 = vand.u32 %v1275, 4294901760
    %1791 = vmatpush1.msra.mxu0 %v1790
    %1792 = vmatprep.subr.mxu0 0.0
    %1793 = vmatpush2.msra.mxu0 0.0
    %1794 = vmatprep.subr.mxu0 0.0
    %1795 = vmatpush2.msra.mxu0 0.0
    %1796 = vmatprep.subr.mxu0 0.0
    %1797 = vmatpush2.msra.mxu0 0.0
    %1798 = vmatprep.subr.mxu0 0.0
    %1799 = vmatpush2.msra.mxu0 0.0
    %1800 = vmatprep.subr.mxu0 0.0
    %1801 = vmatpush2.msra.mxu0 0.0
    %1802 = vmatprep.subr.mxu0 0.0
    %1803 = vmatpush2.msra.mxu0 0.0
    %1804 = vmatprep.subr.mxu0 0.0
    %1805 = vmatpush2.msra.mxu0 0.0
    %1806 = vmatprep.subr.mxu0 0.0
    %1807 = vmatpush2.msra.mxu0 0.0
    %1808 = vmatprep.subr.mxu0 0.0
    %1809 = vmatpush2.msra.mxu0 0.0
    %1810 = vmatprep.subr.mxu0 0.0
    %1811 = vmatpush2.msra.mxu0 0.0
    %1812 = vmatprep.subr.mxu0 0.0
    %1813 = vmatpush2.msra.mxu0 0.0
    %1814 = vmatprep.subr.mxu0 0.0
    %1815 = vmatpush2.msra.mxu0 0.0
    %1816 = vmatprep.subr.mxu0 0.0
    %1817 = vmatpush2.msra.mxu0 0.0
    %1818 = vmatprep.subr.mxu0 0.0
    %1819 = vmatpush2.msra.mxu0 0.0
    %1820 = vmatprep.subr.mxu0 0.0
    %1821 = vmatpush2.msra.mxu0 0.0
    %1822 = vmatprep.subr.mxu0 0.0
    %1823 = vmatpush2.msra.mxu0 0.0
    %1824 = vmatprep.mubr.f32.mxu0 0.0
    %v1825 = vand.u32 %v1292, 4294901760
    %1826 = vmatmul.mubr.f32.gmra.mxu0 %v1825
    %v1827 = vpop.f32.mrf.mxu0
    %v1828 = vadd.f32 %v1749, %v1827
    %v1829 = vpop.f32.mrf.mxu0
    %1830 = vdwg.mxu0
    %v1831 = vxor.u32 %v1828, 2147483648
    %v1832 = vmul.f32 %v1831, 1.442695
    %v1833 = vpow.pop %v1832
    %v1834 = vadd.f32 %v1833, 1.0
    %v1835 = vrcp.pop %v1834
    %v1836 = vmul.f32 1.0, %v1835
    %v1837 = vtanh.pop %v1828
    %1839 = vrot.lane.b32.xlu0 %v1265, 32
    %v1840 = vpop.permute.xlu0 %1839
    %v1842 = vmul.f32 %v1836, %v1840
    %1844 = vrot.lane.b32.xlu0 %v1837, 64
    %v1845 = vpop.permute.xlu0 %1844
    %v1847 = vmul.f32 %v1836, %v1845
    %1849 = vrot.lane.b32.xlu0 %v1847, 32
    %v1850 = vpop.permute.xlu0 %1849
    %v1852 = vadd.f32 %v1842, %v1850
    %v1853 = vtanh.pop %v1852
    %1855 = vrot.lane.b32.xlu0 %v1853, 64
    %v1856 = vpop.permute.xlu0 %1855
    %v1858 = vmul.f32 %v1836, %v1856
    %1860 = vrot.lane.b32.xlu0 %v1858, 32
    %v1861 = vpop.permute.xlu0 %1860
    %s1863 = scalar_lea.vmem %s9, 8
    %1864 = vst.msk [vmem:[%s1863] sm:$0xff] %vm658, %v1861
    %1866 = vrot.lane.b32.xlu0 %v1852, 96
    %v1867 = vpop.permute.xlu0 %1866
    %s1869 = scalar_lea.vmem %s10, 8
    %1870 = vst.msk [vmem:[%s1869] sm:$0xff] %vm658, %v1867
    %1871 = vst.msk [vmem:[#allocation2] sm:$0xff] %vm658, %v1861
    %v1872 = vld [vmem:[#allocation6] sm:$0xff]
    %v1873 = vld [vmem:[#allocation6 + $0x8] sm:$0xff]
    %v1874 = vld [vmem:[#allocation6 + $0x10] sm:$0xff]
    %v1875 = vld [vmem:[#allocation6 + $0x18] sm:$0xff]
    %v1876 = vld [vmem:[%s5] sm:$0x1]
    %v1878 = vlaneseq
    %v1879 = vshrl.u32 %v1878, 7
    %v1880 = vsub.s32 0, %v1879
    %v1881 = vrot.slane %v1876, %v1880
    %v1883 = vsel %vm658, %v1861, 0
    %1885 = vmatprep.subr.mxu0 0.0
    %1886 = vmatpush1.msra.mxu0 0.0
    %1887 = vmatprep.subr.mxu0 0.0
    %1888 = vmatpush1.msra.mxu0 0.0
    %1889 = vmatprep.subr.mxu0 0.0
    %1890 = vmatpush1.msra.mxu0 0.0
    %1891 = vmatprep.subr.mxu0 0.0
    %1892 = vmatpush1.msra.mxu0 0.0
    %1893 = vmatprep.subr.mxu0 0.0
    %1894 = vmatpush1.msra.mxu0 0.0
    %1895 = vmatprep.subr.mxu0 0.0
    %1896 = vmatpush1.msra.mxu0 0.0
    %1897 = vmatprep.subr.mxu0 0.0
    %1898 = vmatpush1.msra.mxu0 0.0
    %1899 = vmatprep.subr.mxu0 0.0
    %1900 = vmatpush1.msra.mxu0 0.0
    %1901 = vmatprep.subr.mxu0 0.0
    %1902 = vmatpush1.msra.mxu0 0.0
    %1903 = vmatprep.subr.mxu0 0.0
    %1904 = vmatpush1.msra.mxu0 0.0
    %1905 = vmatprep.subr.mxu0 0.0
    %1906 = vmatpush1.msra.mxu0 0.0
    %1907 = vmatprep.subr.mxu0 0.0
    %1908 = vmatpush1.msra.mxu0 0.0
    %1909 = vmatprep.subr.mxu0 0.0
    %v1910 = vand.u32 %v1875, 4294901760
    %1911 = vmatpush1.msra.mxu0 %v1910
    %1912 = vmatprep.subr.mxu0 0.0
    %v1913 = vand.u32 %v1874, 4294901760
    %1914 = vmatpush1.msra.mxu0 %v1913
    %1915 = vmatprep.subr.mxu0 0.0
    %v1916 = vand.u32 %v1873, 4294901760
    %1917 = vmatpush1.msra.mxu0 %v1916
    %1918 = vmatprep.subr.mxu0 0.0
    %v1919 = vand.u32 %v1872, 4294901760
    %1920 = vmatpush1.msra.mxu0 %v1919
    %1921 = vmatprep.subr.mxu0 0.0
    %1922 = vmatpush2.msra.mxu0 0.0
    %1923 = vmatprep.subr.mxu0 0.0
    %1924 = vmatpush2.msra.mxu0 0.0
    %1925 = vmatprep.subr.mxu0 0.0
    %1926 = vmatpush2.msra.mxu0 0.0
    %1927 = vmatprep.subr.mxu0 0.0
    %1928 = vmatpush2.msra.mxu0 0.0
    %1929 = vmatprep.subr.mxu0 0.0
    %1930 = vmatpush2.msra.mxu0 0.0
    %1931 = vmatprep.subr.mxu0 0.0
    %1932 = vmatpush2.msra.mxu0 0.0
    %1933 = vmatprep.subr.mxu0 0.0
    %1934 = vmatpush2.msra.mxu0 0.0
    %1935 = vmatprep.subr.mxu0 0.0
    %1936 = vmatpush2.msra.mxu0 0.0
    %1937 = vmatprep.subr.mxu0 0.0
    %1938 = vmatpush2.msra.mxu0 0.0
    %1939 = vmatprep.subr.mxu0 0.0
    %1940 = vmatpush2.msra.mxu0 0.0
    %1941 = vmatprep.subr.mxu0 0.0
    %1942 = vmatpush2.msra.mxu0 0.0
    %1943 = vmatprep.subr.mxu0 0.0
    %1944 = vmatpush2.msra.mxu0 0.0
    %1945 = vmatprep.subr.mxu0 0.0
    %1946 = vmatpush2.msra.mxu0 0.0
    %1947 = vmatprep.subr.mxu0 0.0
    %1948 = vmatpush2.msra.mxu0 0.0
    %1949 = vmatprep.subr.mxu0 0.0
    %1950 = vmatpush2.msra.mxu0 0.0
    %1951 = vmatprep.subr.mxu0 0.0
    %1952 = vmatpush2.msra.mxu0 0.0
    %1953 = vmatprep.mubr.f32.mxu0 0.0
    %v1954 = vand.u32 %v1883, 4294901760
    %v1955 = vsub.f32 %v1883, %v1954
    %v1956 = vand.u32 %v1955, 4294901760
    %v1957 = vsub.f32 %v1955, %v1956
    %v1958 = vand.u32 %v1957, 4294901760
    %1959 = vmatmul.mubr.f32.gmra.mxu0 %v1958
    %v1960 = vpop.f32.mrf.mxu0
    %v1961 = vadd.f32 %v1881, %v1960
    %v1962 = vpop.f32.mrf.mxu0
    %1963 = vdwg.mxu0
    %1964 = vmatprep.subr.mxu0 0.0
    %1965 = vmatpush1.msra.mxu0 0.0
    %1966 = vmatprep.subr.mxu0 0.0
    %1967 = vmatpush1.msra.mxu0 0.0
    %1968 = vmatprep.subr.mxu0 0.0
    %1969 = vmatpush1.msra.mxu0 0.0
    %1970 = vmatprep.subr.mxu0 0.0
    %1971 = vmatpush1.msra.mxu0 0.0
    %1972 = vmatprep.subr.mxu0 0.0
    %1973 = vmatpush1.msra.mxu0 0.0
    %1974 = vmatprep.subr.mxu0 0.0
    %1975 = vmatpush1.msra.mxu0 0.0
    %1976 = vmatprep.subr.mxu0 0.0
    %1977 = vmatpush1.msra.mxu0 0.0
    %1978 = vmatprep.subr.mxu0 0.0
    %1979 = vmatpush1.msra.mxu0 0.0
    %1980 = vmatprep.subr.mxu0 0.0
    %1981 = vmatpush1.msra.mxu0 0.0
    %1982 = vmatprep.subr.mxu0 0.0
    %1983 = vmatpush1.msra.mxu0 0.0
    %1984 = vmatprep.subr.mxu0 0.0
    %1985 = vmatpush1.msra.mxu0 0.0
    %1986 = vmatprep.subr.mxu0 0.0
    %1987 = vmatpush1.msra.mxu0 0.0
    %1988 = vmatprep.subr.mxu0 0.0
    %v1989 = vand.u32 %v1875, 4294901760
    %v1990 = vsub.f32 %v1875, %v1989
    %v1991 = vand.u32 %v1990, 4294901760
    %v1992 = vsub.f32 %v1990, %v1991
    %v1993 = vand.u32 %v1992, 4294901760
    %1994 = vmatpush1.msra.mxu0 %v1993
    %1995 = vmatprep.subr.mxu0 0.0
    %v1996 = vand.u32 %v1874, 4294901760
    %v1997 = vsub.f32 %v1874, %v1996
    %v1998 = vand.u32 %v1997, 4294901760
    %v1999 = vsub.f32 %v1997, %v1998
    %v2000 = vand.u32 %v1999, 4294901760
    %2001 = vmatpush1.msra.mxu0 %v2000
    %2002 = vmatprep.subr.mxu0 0.0
    %v2003 = vand.u32 %v1873, 4294901760
    %v2004 = vsub.f32 %v1873, %v2003
    %v2005 = vand.u32 %v2004, 4294901760
    %v2006 = vsub.f32 %v2004, %v2005
    %v2007 = vand.u32 %v2006, 4294901760
    %2008 = vmatpush1.msra.mxu0 %v2007
    %2009 = vmatprep.subr.mxu0 0.0
    %v2010 = vand.u32 %v1872, 4294901760
    %v2011 = vsub.f32 %v1872, %v2010
    %v2012 = vand.u32 %v2011, 4294901760
    %v2013 = vsub.f32 %v2011, %v2012
    %v2014 = vand.u32 %v2013, 4294901760
    %2015 = vmatpush1.msra.mxu0 %v2014
    %2016 = vmatprep.subr.mxu0 0.0
    %2017 = vmatpush2.msra.mxu0 0.0
    %2018 = vmatprep.subr.mxu0 0.0
    %2019 = vmatpush2.msra.mxu0 0.0
    %2020 = vmatprep.subr.mxu0 0.0
    %2021 = vmatpush2.msra.mxu0 0.0
    %2022 = vmatprep.subr.mxu0 0.0
    %2023 = vmatpush2.msra.mxu0 0.0
    %2024 = vmatprep.subr.mxu0 0.0
    %2025 = vmatpush2.msra.mxu0 0.0
    %2026 = vmatprep.subr.mxu0 0.0
    %2027 = vmatpush2.msra.mxu0 0.0
    %2028 = vmatprep.subr.mxu0 0.0
    %2029 = vmatpush2.msra.mxu0 0.0
    %2030 = vmatprep.subr.mxu0 0.0
    %2031 = vmatpush2.msra.mxu0 0.0
    %2032 = vmatprep.subr.mxu0 0.0
    %2033 = vmatpush2.msra.mxu0 0.0
    %2034 = vmatprep.subr.mxu0 0.0
    %2035 = vmatpush2.msra.mxu0 0.0
    %2036 = vmatprep.subr.mxu0 0.0
    %2037 = vmatpush2.msra.mxu0 0.0
    %2038 = vmatprep.subr.mxu0 0.0
    %2039 = vmatpush2.msra.mxu0 0.0
    %2040 = vmatprep.subr.mxu0 0.0
    %2041 = vmatpush2.msra.mxu0 0.0
    %2042 = vmatprep.subr.mxu0 0.0
    %2043 = vmatpush2.msra.mxu0 0.0
    %2044 = vmatprep.subr.mxu0 0.0
    %2045 = vmatpush2.msra.mxu0 0.0
    %2046 = vmatprep.subr.mxu0 0.0
    %2047 = vmatpush2.msra.mxu0 0.0
    %2048 = vmatprep.mubr.f32.mxu0 0.0
    %v2049 = vand.u32 %v1883, 4294901760
    %2050 = vmatmul.mubr.f32.gmra.mxu0 %v2049
    %v2051 = vpop.f32.mrf.mxu0
    %v2052 = vadd.f32 %v1961, %v2051
    %v2053 = vpop.f32.mrf.mxu0
    %2054 = vdwg.mxu0
    %2055 = vmatprep.subr.mxu0 0.0
    %2056 = vmatpush1.msra.mxu0 0.0
    %2057 = vmatprep.subr.mxu0 0.0
    %2058 = vmatpush1.msra.mxu0 0.0
    %2059 = vmatprep.subr.mxu0 0.0
    %2060 = vmatpush1.msra.mxu0 0.0
    %2061 = vmatprep.subr.mxu0 0.0
    %2062 = vmatpush1.msra.mxu0 0.0
    %2063 = vmatprep.subr.mxu0 0.0
    %2064 = vmatpush1.msra.mxu0 0.0
    %2065 = vmatprep.subr.mxu0 0.0
    %2066 = vmatpush1.msra.mxu0 0.0
    %2067 = vmatprep.subr.mxu0 0.0
    %2068 = vmatpush1.msra.mxu0 0.0
    %2069 = vmatprep.subr.mxu0 0.0
    %2070 = vmatpush1.msra.mxu0 0.0
    %2071 = vmatprep.subr.mxu0 0.0
    %2072 = vmatpush1.msra.mxu0 0.0
    %2073 = vmatprep.subr.mxu0 0.0
    %2074 = vmatpush1.msra.mxu0 0.0
    %2075 = vmatprep.subr.mxu0 0.0
    %2076 = vmatpush1.msra.mxu0 0.0
    %2077 = vmatprep.subr.mxu0 0.0
    %2078 = vmatpush1.msra.mxu0 0.0
    %2079 = vmatprep.subr.mxu0 0.0
    %v2080 = vand.u32 %v1875, 4294901760
    %v2081 = vsub.f32 %v1875, %v2080
    %2082 = vmatpush1.msra.mxu0 %v2081
    %2083 = vmatprep.subr.mxu0 0.0
    %v2084 = vand.u32 %v1874, 4294901760
    %v2085 = vsub.f32 %v1874, %v2084
    %2086 = vmatpush1.msra.mxu0 %v2085
    %2087 = vmatprep.subr.mxu0 0.0
    %v2088 = vand.u32 %v1873, 4294901760
    %v2089 = vsub.f32 %v1873, %v2088
    %2090 = vmatpush1.msra.mxu0 %v2089
    %2091 = vmatprep.subr.mxu0 0.0
    %v2092 = vand.u32 %v1872, 4294901760
    %v2093 = vsub.f32 %v1872, %v2092
    %2094 = vmatpush1.msra.mxu0 %v2093
    %2095 = vmatprep.subr.mxu0 0.0
    %2096 = vmatpush2.msra.mxu0 0.0
    %2097 = vmatprep.subr.mxu0 0.0
    %2098 = vmatpush2.msra.mxu0 0.0
    %2099 = vmatprep.subr.mxu0 0.0
    %2100 = vmatpush2.msra.mxu0 0.0
    %2101 = vmatprep.subr.mxu0 0.0
    %2102 = vmatpush2.msra.mxu0 0.0
    %2103 = vmatprep.subr.mxu0 0.0
    %2104 = vmatpush2.msra.mxu0 0.0
    %2105 = vmatprep.subr.mxu0 0.0
    %2106 = vmatpush2.msra.mxu0 0.0
    %2107 = vmatprep.subr.mxu0 0.0
    %2108 = vmatpush2.msra.mxu0 0.0
    %2109 = vmatprep.subr.mxu0 0.0
    %2110 = vmatpush2.msra.mxu0 0.0
    %2111 = vmatprep.subr.mxu0 0.0
    %2112 = vmatpush2.msra.mxu0 0.0
    %2113 = vmatprep.subr.mxu0 0.0
    %2114 = vmatpush2.msra.mxu0 0.0
    %2115 = vmatprep.subr.mxu0 0.0
    %2116 = vmatpush2.msra.mxu0 0.0
    %2117 = vmatprep.subr.mxu0 0.0
    %2118 = vmatpush2.msra.mxu0 0.0
    %2119 = vmatprep.subr.mxu0 0.0
    %2120 = vmatpush2.msra.mxu0 0.0
    %2121 = vmatprep.subr.mxu0 0.0
    %2122 = vmatpush2.msra.mxu0 0.0
    %2123 = vmatprep.subr.mxu0 0.0
    %2124 = vmatpush2.msra.mxu0 0.0
    %2125 = vmatprep.subr.mxu0 0.0
    %2126 = vmatpush2.msra.mxu0 0.0
    %2127 = vmatprep.mubr.f32.mxu0 0.0
    %v2128 = vand.u32 %v1883, 4294901760
    %v2129 = vsub.f32 %v1883, %v2128
    %2130 = vmatmul.mubr.f32.gmra.mxu0 %v2129
    %v2131 = vpop.f32.mrf.mxu0
    %v2132 = vadd.f32 %v2052, %v2131
    %v2133 = vpop.f32.mrf.mxu0
    %2134 = vdwg.mxu0
    %2135 = vmatprep.subr.mxu0 0.0
    %2136 = vmatpush1.msra.mxu0 0.0
    %2137 = vmatprep.subr.mxu0 0.0
    %2138 = vmatpush1.msra.mxu0 0.0
    %2139 = vmatprep.subr.mxu0 0.0
    %2140 = vmatpush1.msra.mxu0 0.0
    %2141 = vmatprep.subr.mxu0 0.0
    %2142 = vmatpush1.msra.mxu0 0.0
    %2143 = vmatprep.subr.mxu0 0.0
    %2144 = vmatpush1.msra.mxu0 0.0
    %2145 = vmatprep.subr.mxu0 0.0
    %2146 = vmatpush1.msra.mxu0 0.0
    %2147 = vmatprep.subr.mxu0 0.0
    %2148 = vmatpush1.msra.mxu0 0.0
    %2149 = vmatprep.subr.mxu0 0.0
    %2150 = vmatpush1.msra.mxu0 0.0
    %2151 = vmatprep.subr.mxu0 0.0
    %2152 = vmatpush1.msra.mxu0 0.0
    %2153 = vmatprep.subr.mxu0 0.0
    %2154 = vmatpush1.msra.mxu0 0.0
    %2155 = vmatprep.subr.mxu0 0.0
    %2156 = vmatpush1.msra.mxu0 0.0
    %2157 = vmatprep.subr.mxu0 0.0
    %2158 = vmatpush1.msra.mxu0 0.0
    %2159 = vmatprep.subr.mxu0 0.0
    %v2160 = vand.u32 %v1875, 4294901760
    %2161 = vmatpush1.msra.mxu0 %v2160
    %2162 = vmatprep.subr.mxu0 0.0
    %v2163 = vand.u32 %v1874, 4294901760
    %2164 = vmatpush1.msra.mxu0 %v2163
    %2165 = vmatprep.subr.mxu0 0.0
    %v2166 = vand.u32 %v1873, 4294901760
    %2167 = vmatpush1.msra.mxu0 %v2166
    %2168 = vmatprep.subr.mxu0 0.0
    %v2169 = vand.u32 %v1872, 4294901760
    %2170 = vmatpush1.msra.mxu0 %v2169
    %2171 = vmatprep.subr.mxu0 0.0
    %2172 = vmatpush2.msra.mxu0 0.0
    %2173 = vmatprep.subr.mxu0 0.0
    %2174 = vmatpush2.msra.mxu0 0.0
    %2175 = vmatprep.subr.mxu0 0.0
    %2176 = vmatpush2.msra.mxu0 0.0
    %2177 = vmatprep.subr.mxu0 0.0
    %2178 = vmatpush2.msra.mxu0 0.0
    %2179 = vmatprep.subr.mxu0 0.0
    %2180 = vmatpush2.msra.mxu0 0.0
    %2181 = vmatprep.subr.mxu0 0.0
    %2182 = vmatpush2.msra.mxu0 0.0
    %2183 = vmatprep.subr.mxu0 0.0
    %2184 = vmatpush2.msra.mxu0 0.0
    %2185 = vmatprep.subr.mxu0 0.0
    %2186 = vmatpush2.msra.mxu0 0.0
    %2187 = vmatprep.subr.mxu0 0.0
    %2188 = vmatpush2.msra.mxu0 0.0
    %2189 = vmatprep.subr.mxu0 0.0
    %2190 = vmatpush2.msra.mxu0 0.0
    %2191 = vmatprep.subr.mxu0 0.0
    %2192 = vmatpush2.msra.mxu0 0.0
    %2193 = vmatprep.subr.mxu0 0.0
    %2194 = vmatpush2.msra.mxu0 0.0
    %2195 = vmatprep.subr.mxu0 0.0
    %2196 = vmatpush2.msra.mxu0 0.0
    %2197 = vmatprep.subr.mxu0 0.0
    %2198 = vmatpush2.msra.mxu0 0.0
    %2199 = vmatprep.subr.mxu0 0.0
    %2200 = vmatpush2.msra.mxu0 0.0
    %2201 = vmatprep.subr.mxu0 0.0
    %2202 = vmatpush2.msra.mxu0 0.0
    %2203 = vmatprep.mubr.f32.mxu0 0.0
    %v2204 = vand.u32 %v1883, 4294901760
    %v2205 = vsub.f32 %v1883, %v2204
    %v2206 = vand.u32 %v2205, 4294901760
    %2207 = vmatmul.mubr.f32.gmra.mxu0 %v2206
    %v2208 = vpop.f32.mrf.mxu0
    %v2209 = vadd.f32 %v2132, %v2208
    %v2210 = vpop.f32.mrf.mxu0
    %2211 = vdwg.mxu0
    %2212 = vmatprep.subr.mxu0 0.0
    %2213 = vmatpush1.msra.mxu0 0.0
    %2214 = vmatprep.subr.mxu0 0.0
    %2215 = vmatpush1.msra.mxu0 0.0
    %2216 = vmatprep.subr.mxu0 0.0
    %2217 = vmatpush1.msra.mxu0 0.0
    %2218 = vmatprep.subr.mxu0 0.0
    %2219 = vmatpush1.msra.mxu0 0.0
    %2220 = vmatprep.subr.mxu0 0.0
    %2221 = vmatpush1.msra.mxu0 0.0
    %2222 = vmatprep.subr.mxu0 0.0
    %2223 = vmatpush1.msra.mxu0 0.0
    %2224 = vmatprep.subr.mxu0 0.0
    %2225 = vmatpush1.msra.mxu0 0.0
    %2226 = vmatprep.subr.mxu0 0.0
    %2227 = vmatpush1.msra.mxu0 0.0
    %2228 = vmatprep.subr.mxu0 0.0
    %2229 = vmatpush1.msra.mxu0 0.0
    %2230 = vmatprep.subr.mxu0 0.0
    %2231 = vmatpush1.msra.mxu0 0.0
    %2232 = vmatprep.subr.mxu0 0.0
    %2233 = vmatpush1.msra.mxu0 0.0
    %2234 = vmatprep.subr.mxu0 0.0
    %2235 = vmatpush1.msra.mxu0 0.0
    %2236 = vmatprep.subr.mxu0 0.0
    %v2237 = vand.u32 %v1875, 4294901760
    %v2238 = vsub.f32 %v1875, %v2237
    %v2239 = vand.u32 %v2238, 4294901760
    %2240 = vmatpush1.msra.mxu0 %v2239
    %2241 = vmatprep.subr.mxu0 0.0
    %v2242 = vand.u32 %v1874, 4294901760
    %v2243 = vsub.f32 %v1874, %v2242
    %v2244 = vand.u32 %v2243, 4294901760
    %2245 = vmatpush1.msra.mxu0 %v2244
    %2246 = vmatprep.subr.mxu0 0.0
    %v2247 = vand.u32 %v1873, 4294901760
    %v2248 = vsub.f32 %v1873, %v2247
    %v2249 = vand.u32 %v2248, 4294901760
    %2250 = vmatpush1.msra.mxu0 %v2249
    %2251 = vmatprep.subr.mxu0 0.0
    %v2252 = vand.u32 %v1872, 4294901760
    %v2253 = vsub.f32 %v1872, %v2252
    %v2254 = vand.u32 %v2253, 4294901760
    %2255 = vmatpush1.msra.mxu0 %v2254
    %2256 = vmatprep.subr.mxu0 0.0
    %2257 = vmatpush2.msra.mxu0 0.0
    %2258 = vmatprep.subr.mxu0 0.0
    %2259 = vmatpush2.msra.mxu0 0.0
    %2260 = vmatprep.subr.mxu0 0.0
    %2261 = vmatpush2.msra.mxu0 0.0
    %2262 = vmatprep.subr.mxu0 0.0
    %2263 = vmatpush2.msra.mxu0 0.0
    %2264 = vmatprep.subr.mxu0 0.0
    %2265 = vmatpush2.msra.mxu0 0.0
    %2266 = vmatprep.subr.mxu0 0.0
    %2267 = vmatpush2.msra.mxu0 0.0
    %2268 = vmatprep.subr.mxu0 0.0
    %2269 = vmatpush2.msra.mxu0 0.0
    %2270 = vmatprep.subr.mxu0 0.0
    %2271 = vmatpush2.msra.mxu0 0.0
    %2272 = vmatprep.subr.mxu0 0.0
    %2273 = vmatpush2.msra.mxu0 0.0
    %2274 = vmatprep.subr.mxu0 0.0
    %2275 = vmatpush2.msra.mxu0 0.0
    %2276 = vmatprep.subr.mxu0 0.0
    %2277 = vmatpush2.msra.mxu0 0.0
    %2278 = vmatprep.subr.mxu0 0.0
    %2279 = vmatpush2.msra.mxu0 0.0
    %2280 = vmatprep.subr.mxu0 0.0
    %2281 = vmatpush2.msra.mxu0 0.0
    %2282 = vmatprep.subr.mxu0 0.0
    %2283 = vmatpush2.msra.mxu0 0.0
    %2284 = vmatprep.subr.mxu0 0.0
    %2285 = vmatpush2.msra.mxu0 0.0
    %2286 = vmatprep.subr.mxu0 0.0
    %2287 = vmatpush2.msra.mxu0 0.0
    %2288 = vmatprep.mubr.f32.mxu0 0.0
    %v2289 = vand.u32 %v1883, 4294901760
    %2290 = vmatmul.mubr.f32.gmra.mxu0 %v2289
    %v2291 = vpop.f32.mrf.mxu0
    %v2292 = vadd.f32 %v2209, %v2291
    %v2293 = vpop.f32.mrf.mxu0
    %2294 = vdwg.mxu0
    %2295 = vmatprep.subr.mxu0 0.0
    %2296 = vmatpush1.msra.mxu0 0.0
    %2297 = vmatprep.subr.mxu0 0.0
    %2298 = vmatpush1.msra.mxu0 0.0
    %2299 = vmatprep.subr.mxu0 0.0
    %2300 = vmatpush1.msra.mxu0 0.0
    %2301 = vmatprep.subr.mxu0 0.0
    %2302 = vmatpush1.msra.mxu0 0.0
    %2303 = vmatprep.subr.mxu0 0.0
    %2304 = vmatpush1.msra.mxu0 0.0
    %2305 = vmatprep.subr.mxu0 0.0
    %2306 = vmatpush1.msra.mxu0 0.0
    %2307 = vmatprep.subr.mxu0 0.0
    %2308 = vmatpush1.msra.mxu0 0.0
    %2309 = vmatprep.subr.mxu0 0.0
    %2310 = vmatpush1.msra.mxu0 0.0
    %2311 = vmatprep.subr.mxu0 0.0
    %2312 = vmatpush1.msra.mxu0 0.0
    %2313 = vmatprep.subr.mxu0 0.0
    %2314 = vmatpush1.msra.mxu0 0.0
    %2315 = vmatprep.subr.mxu0 0.0
    %2316 = vmatpush1.msra.mxu0 0.0
    %2317 = vmatprep.subr.mxu0 0.0
    %2318 = vmatpush1.msra.mxu0 0.0
    %2319 = vmatprep.subr.mxu0 0.0
    %v2320 = vand.u32 %v1875, 4294901760
    %2321 = vmatpush1.msra.mxu0 %v2320
    %2322 = vmatprep.subr.mxu0 0.0
    %v2323 = vand.u32 %v1874, 4294901760
    %2324 = vmatpush1.msra.mxu0 %v2323
    %2325 = vmatprep.subr.mxu0 0.0
    %v2326 = vand.u32 %v1873, 4294901760
    %2327 = vmatpush1.msra.mxu0 %v2326
    %2328 = vmatprep.subr.mxu0 0.0
    %v2329 = vand.u32 %v1872, 4294901760
    %2330 = vmatpush1.msra.mxu0 %v2329
    %2331 = vmatprep.subr.mxu0 0.0
    %2332 = vmatpush2.msra.mxu0 0.0
    %2333 = vmatprep.subr.mxu0 0.0
    %2334 = vmatpush2.msra.mxu0 0.0
    %2335 = vmatprep.subr.mxu0 0.0
    %2336 = vmatpush2.msra.mxu0 0.0
    %2337 = vmatprep.subr.mxu0 0.0
    %2338 = vmatpush2.msra.mxu0 0.0
    %2339 = vmatprep.subr.mxu0 0.0
    %2340 = vmatpush2.msra.mxu0 0.0
    %2341 = vmatprep.subr.mxu0 0.0
    %2342 = vmatpush2.msra.mxu0 0.0
    %2343 = vmatprep.subr.mxu0 0.0
    %2344 = vmatpush2.msra.mxu0 0.0
    %2345 = vmatprep.subr.mxu0 0.0
    %2346 = vmatpush2.msra.mxu0 0.0
    %2347 = vmatprep.subr.mxu0 0.0
    %2348 = vmatpush2.msra.mxu0 0.0
    %2349 = vmatprep.subr.mxu0 0.0
    %2350 = vmatpush2.msra.mxu0 0.0
    %2351 = vmatprep.subr.mxu0 0.0
    %2352 = vmatpush2.msra.mxu0 0.0
    %2353 = vmatprep.subr.mxu0 0.0
    %2354 = vmatpush2.msra.mxu0 0.0
    %2355 = vmatprep.subr.mxu0 0.0
    %2356 = vmatpush2.msra.mxu0 0.0
    %2357 = vmatprep.subr.mxu0 0.0
    %2358 = vmatpush2.msra.mxu0 0.0
    %2359 = vmatprep.subr.mxu0 0.0
    %2360 = vmatpush2.msra.mxu0 0.0
    %2361 = vmatprep.subr.mxu0 0.0
    %2362 = vmatpush2.msra.mxu0 0.0
    %2363 = vmatprep.mubr.f32.mxu0 0.0
    %v2364 = vand.u32 %v1883, 4294901760
    %2365 = vmatmul.mubr.f32.gmra.mxu0 %v2364
    %v2366 = vpop.f32.mrf.mxu0
    %v2367 = vadd.f32 %v2292, %v2366
    %v2368 = vpop.f32.mrf.mxu0
    %2369 = vdwg.mxu0
    %2370 = vst [vmem:[%s8] sm:$0xff] %v2367
    // Predicated region
    $region42: #{decoder_forward.1} parent=1 // pred_check
      _
    $region43: #{decoder_forward.1} parent=1 // pred_check_branch
      %2372 = sbr.rel (0) target = $region45
    $region44: #{decoder_forward.1} parent=1 // pred_region
      _
    $region45: #{decoder_forward.1} parent=1 // pred_fallthru
      _
    // Predicated region
    $region46: #{decoder_forward.1} parent=1 // pred_check
      _
    $region47: #{decoder_forward.1} parent=1 // pred_check_branch
      %2374 = sbr.rel (0) target = $region49
    $region48: #{decoder_forward.1} parent=1 // pred_region
      _
    $region49: #{decoder_forward.1} parent=1 // pred_fallthru
      _
    // Predicated region
    $region50: #{decoder_forward.1} parent=1 // pred_check
      _
    $region51: #{decoder_forward.1} parent=1 // pred_check_branch
      %2376 = sbr.rel (0) target = $region53
    $region52: #{decoder_forward.1} parent=1 // pred_region
      _
    $region53: #{decoder_forward.1} parent=1 // pred_fallthru
      _
    // Predicated region
    $region54: #{decoder_forward.1} parent=1 // pred_check
      _
    $region55: #{decoder_forward.1} parent=1 // pred_check_branch
      %2378 = sbr.rel (0) target = $region57
    $region56: #{decoder_forward.1} parent=1 // pred_region
      _
    $region57: #{decoder_forward.1} parent=1 // pred_fallthru
      _
    // Predicated region
    $region58: #{decoder_forward.1} parent=1 // pred_check
      _
    $region59: #{decoder_forward.1} parent=1 // pred_check_branch
      %2380 = sbr.rel (0) target = $region61
    $region60: #{decoder_forward.1} parent=1 // pred_region
      _
    $region61: #{decoder_forward.1} parent=1 // pred_fallthru
      _
    // Predicated region
    $region62: #{decoder_forward.1} parent=1 // pred_check
      _
    $region63: #{decoder_forward.1} parent=1 // pred_check_branch
      %2382 = sbr.rel (0) target = $region65
    $region64: #{decoder_forward.1} parent=1 // pred_region
      _
    $region65: #{decoder_forward.1} parent=1 // pred_fallthru
      _
    %2383 = vsyncpa [#allocation4], 1
    %2384 = vsyncpa [#allocation5], 1

</llo_original>
